<compile_context>
chip_gen: v5e
topology: v5e:2x2
jax: 0.10.0
libtpu: 0.0.40
codegen_flags: <defaults>
</compile_context>

<pallas_src>
import math

import jax
import jax.numpy as jnp
from jax.experimental import pallas as pl
from jax.experimental.pallas import tpu as pltpu  # noqa: F401  (kept for TPU-specific params if scaled up)

# ---------------- model config (small, consistent with the module) -------------
DIM_H = 32
NUM_HEADS = 8
HEAD_DIM = DIM_H // NUM_HEADS
BATCH = 2
SEQ = 8
LN_EPS = 1e-5          # nn.LayerNorm default (ln_mha / ln_ff)
NEG_INF = -1.0e8       # masked_fill value used by the module


def _layernorm(v, gamma, beta, eps):
    mu = jnp.mean(v, axis=-1, keepdims=True)
    var = jnp.mean((v - mu) ** 2, axis=-1, keepdims=True)
    return (v - mu) * jax.lax.rsqrt(var + eps) * gamma + beta


def basic_block_kernel(
    x_ref, bias_ref,
    wqkv_ref, wo_ref,
    w1_ref, b1_ref, w2_ref, b2_ref,
    g_mha_ref, b_mha_ref, g_ff_ref, b_ff_ref,
    o_ref,
):
    H, NH, HD = DIM_H, NUM_HEADS, HEAD_DIM

    x = x_ref[...]                       # (B*S, H)
    bias = bias_ref[...]                 # (B*S, B*S) additive mask (0 / -1e8, block-diag in batch)

    # ---- MHA (pre_ln=False -> ln is Identity; dropout_ratio=0 -> identity) ----
    # fused QKV: one (B*S, H) @ (H, 3H) matmul
    qkv = jnp.dot(x, wqkv_ref[...], preferred_element_type=jnp.float32)   # (B*S, 3H)
    q = qkv[:, 0 * H:1 * H]
    k = qkv[:, 1 * H:2 * H]
    v = qkv[:, 2 * H:3 * H]
    wo = wo_ref[...]

    scale = 1.0 / math.sqrt(HD)
    nt_dims = (((1,), (1,)), ((), ()))   # contract last dims: q @ k^T without explicit transpose

    attn = None
    for h in range(NH):                  # static unroll; each head sees all B*S rows at once
        lo, hi = h * HD, (h + 1) * HD
        qh = q[:, lo:hi]                 # (B*S, HD)
        kh = k[:, lo:hi]
        vh = v[:, lo:hi]
        s = jax.lax.dot_general(qh, kh, nt_dims,
                                preferred_element_type=jnp.float32) * scale + bias
        s = s - jnp.max(s, axis=-1, keepdims=True)
        p = jnp.exp(s)
        p = p * pl.reciprocal(jnp.sum(p, axis=-1, keepdims=True), approx=True)
        oh = jnp.dot(p, vh, preferred_element_type=jnp.float32)           # (B*S, HD)
        # fold the output projection per head (replaces lane-concat + single big matmul)
        contrib = jnp.dot(oh, wo[lo:hi, :], preferred_element_type=jnp.float32)
        attn = contrib if attn is None else attn + contrib

    mha_out = x + attn                   # residual

    # ---- ln_mha (post-LN) ----
    y = _layernorm(mha_out, g_mha_ref[...], b_mha_ref[...], LN_EPS)

    # ---- FF: fc1 -> exact-erf GELU -> fc2 -> +residual ----
    h1 = jnp.dot(y, w1_ref[...], preferred_element_type=jnp.float32) + b1_ref[...]
    h1 = h1 * 0.5 * (1.0 + jax.lax.erf(h1 * (1.0 / math.sqrt(2.0))))
    h2 = jnp.dot(h1, w2_ref[...], preferred_element_type=jnp.float32) + b2_ref[...]
    ff_out = h2 + y

    # ---- ln_ff ----
    o_ref[...] = _layernorm(ff_out, g_ff_ref[...], b_ff_ref[...], LN_EPS)


def basic_block(x, mask, params):
    """x: (B, S, H) f32; mask: (S, S) — zeros are masked (as in masked_fill(mask==0))."""
    B, S, H = x.shape
    x_flat = x.reshape(B * S, H)

    # Additive mask bias, block-diagonal over the flattened batch, so attention over all
    # B*S rows never mixes batches (cross-batch scores get -1e8 -> exp underflows to 0).
    bias_s = jnp.where(mask == 0, NEG_INF, 0.0).astype(jnp.float32)          # (S, S)
    same_b = jnp.eye(B, dtype=jnp.float32)[:, None, :, None]                 # (B,1,B,1)
    bias = jnp.where(same_b > 0.5, bias_s[None, :, None, :], NEG_INF)        # (B,S,B,S)
    bias = bias.reshape(B * S, B * S)

    # Fuse Q/K/V projection weights (a one-time parameter repack).
    wqkv = jnp.concatenate([params["wq"], params["wk"], params["wv"]], axis=1)   # (H, 3H)

    # Single invocation: no grid, every operand is a whole-array VMEM block (no
    # per-step pipelining / double-buffering of the tiny constant weights).
    out_flat = pl.pallas_call(
        basic_block_kernel,
        out_shape=jax.ShapeDtypeStruct((B * S, H), jnp.float32),
    )(
        x_flat, bias, wqkv, params["wo"],
        params["w1"], params["b1"], params["w2"], params["b2"],
        params["g_mha"], params["b_mha"], params["g_ff"], params["b_ff"],
    )
    return out_flat.reshape(B, S, H)


# ------------------------------ pure-JAX reference -----------------------------
def reference(x, mask, p):
    B, S, H = x.shape
    d = HEAD_DIM
    q = x @ p["wq"]; k = x @ p["wk"]; v = x @ p["wv"]
    qr = q.reshape(B, S, NUM_HEADS, d).transpose(0, 2, 1, 3)
    kr = k.reshape(B, S, NUM_HEADS, d).transpose(0, 2, 1, 3)
    vr = v.reshape(B, S, NUM_HEADS, d).transpose(0, 2, 1, 3)
    s = jnp.einsum("bhqd,bhkd->bhqk", qr, kr) / math.sqrt(d)
    s = jnp.where(mask[None, None] == 0, NEG_INF, s)
    a = jax.nn.softmax(s, axis=-1)
    o = jnp.einsum("bhqk,bhkd->bhqd", a, vr).transpose(0, 2, 1, 3).reshape(B, S, H)
    mha_out = x + o @ p["wo"]

    def ln(v_, g, b):
        mu = jnp.mean(v_, -1, keepdims=True)
        var = jnp.mean((v_ - mu) ** 2, -1, keepdims=True)
        return (v_ - mu) / jnp.sqrt(var + LN_EPS) * g + b

    y = ln(mha_out, p["g_mha"], p["b_mha"])
    h1 = y @ p["w1"] + p["b1"]
    h1 = h1 * 0.5 * (1.0 + jax.lax.erf(h1 / math.sqrt(2.0)))
    ff = h1 @ p["w2"] + p["b2"] + y
    return ln(ff, p["g_ff"], p["b_ff"])


if __name__ == "__main__":
    key = jax.random.PRNGKey(0)
    keys = jax.random.split(key, 10)

    # Deterministic parameter init (weights stored already transposed: (in, out)).
    p = {
        "wq": jax.random.normal(keys[0], (DIM_H, DIM_H), jnp.float32) * 0.05,
        "wk": jax.random.normal(keys[1], (DIM_H, DIM_H), jnp.float32) * 0.05,
        "wv": jax.random.normal(keys[2], (DIM_H, DIM_H), jnp.float32) * 0.05,
        "wo": jax.random.normal(keys[3], (DIM_H, DIM_H), jnp.float32) * 0.05,
        "w1": jax.random.normal(keys[4], (DIM_H, DIM_H), jnp.float32) * 0.05,
        "b1": jax.random.normal(keys[5], (1, DIM_H), jnp.float32) * 0.01,
        "w2": jax.random.normal(keys[6], (DIM_H, DIM_H), jnp.float32) * 0.05,
        "b2": jax.random.normal(keys[7], (1, DIM_H), jnp.float32) * 0.01,
        "g_mha": jnp.ones((1, DIM_H), jnp.float32),
        "b_mha": jnp.zeros((1, DIM_H), jnp.float32),
        "g_ff": jnp.ones((1, DIM_H), jnp.float32),
        "b_ff": jnp.zeros((1, DIM_H), jnp.float32),
    }

    x = jax.random.normal(keys[8], (BATCH, SEQ, DIM_H), jnp.float32)
    # Causal mask (zeros above the diagonal are masked), as typically used by SASRec.
    mask = jnp.tril(jnp.ones((SEQ, SEQ), jnp.float32))

    out = jax.block_until_ready(basic_block(x, mask, p))
    ref = reference(x, mask, p)

    assert out.shape == (BATCH, SEQ, DIM_H)
    max_err = float(jnp.max(jnp.abs(out - ref)))
    # tolerance widened slightly vs f64-exact because the softmax denominator uses the
    # EUP approximate reciprocal (pl.reciprocal(..., approx=True)).
    assert jnp.allclose(out, ref, rtol=1e-3, atol=1e-3), max_err

    print("KERNEL_OK")
</pallas_src>

<mosaic_0001>
module attributes {stable_mosaic.version = 11 : i64} {
  func.func @basic_block_kernel(%arg0: memref<16x32xf32, #tpu.memory_space<vmem>>, %arg1: memref<16x16xf32, #tpu.memory_space<vmem>>, %arg2: memref<32x96xf32, #tpu.memory_space<vmem>>, %arg3: memref<32x32xf32, #tpu.memory_space<vmem>>, %arg4: memref<32x32xf32, #tpu.memory_space<vmem>>, %arg5: memref<1x32xf32, #tpu.memory_space<vmem>>, %arg6: memref<32x32xf32, #tpu.memory_space<vmem>>, %arg7: memref<1x32xf32, #tpu.memory_space<vmem>>, %arg8: memref<1x32xf32, #tpu.memory_space<vmem>>, %arg9: memref<1x32xf32, #tpu.memory_space<vmem>>, %arg10: memref<1x32xf32, #tpu.memory_space<vmem>>, %arg11: memref<1x32xf32, #tpu.memory_space<vmem>>, %arg12: memref<16x32xf32, #tpu.memory_space<vmem>>) attributes {dimension_semantics = [], scalar_prefetch = 0 : i64, scratch_operands = 0 : i64, tpu.core_type = #tpu.core_type<tc>} {
    %c0 = arith.constant 0 : index
    %c0_0 = arith.constant 0 : index
    %0 = vector.load %arg0[%c0, %c0_0] : memref<16x32xf32, #tpu.memory_space<vmem>>, vector<16x32xf32>
    %c0_1 = arith.constant 0 : index
    %c0_2 = arith.constant 0 : index
    %1 = vector.load %arg1[%c0_1, %c0_2] : memref<16x16xf32, #tpu.memory_space<vmem>>, vector<16x16xf32>
    %c0_3 = arith.constant 0 : index
    %c0_4 = arith.constant 0 : index
    %2 = vector.load %arg2[%c0_3, %c0_4] : memref<32x96xf32, #tpu.memory_space<vmem>>, vector<32x96xf32>
    %cst = arith.constant dense<0.000000e+00> : vector<16x96xf32>
    %3 = tpu.matmul %0, %2, %cst {dimension_numbers = #tpu.dot_dimension_numbers<[1], [0], [0], [1], [0, 0, 1, 1], [], []>} : vector<16x32xf32>, vector<32x96xf32>, vector<16x96xf32> -> vector<16x96xf32>
    %4 = vector.extract_strided_slice %3 {offsets = [0, 0], sizes = [16, 32], strides = [1, 1]} : vector<16x96xf32> to vector<16x32xf32>
    %5 = vector.extract_strided_slice %3 {offsets = [0, 32], sizes = [16, 32], strides = [1, 1]} : vector<16x96xf32> to vector<16x32xf32>
    %6 = vector.extract_strided_slice %3 {offsets = [0, 64], sizes = [16, 32], strides = [1, 1]} : vector<16x96xf32> to vector<16x32xf32>
    %c0_5 = arith.constant 0 : index
    %c0_6 = arith.constant 0 : index
    %7 = vector.load %arg3[%c0_5, %c0_6] : memref<32x32xf32, #tpu.memory_space<vmem>>, vector<32x32xf32>
    %8 = vector.extract_strided_slice %4 {offsets = [0, 0], sizes = [16, 4], strides = [1, 1]} : vector<16x32xf32> to vector<16x4xf32>
    %9 = vector.extract_strided_slice %5 {offsets = [0, 0], sizes = [16, 4], strides = [1, 1]} : vector<16x32xf32> to vector<16x4xf32>
    %10 = vector.extract_strided_slice %6 {offsets = [0, 0], sizes = [16, 4], strides = [1, 1]} : vector<16x32xf32> to vector<16x4xf32>
    %cst_7 = arith.constant dense<0.000000e+00> : vector<16x16xf32>
    %11 = tpu.matmul %8, %9, %cst_7 {dimension_numbers = #tpu.dot_dimension_numbers<[1], [1], [0], [0], [0, 0, 1, 0], [], []>} : vector<16x4xf32>, vector<16x4xf32>, vector<16x16xf32> -> vector<16x16xf32>
    %cst_8 = arith.constant 5.000000e-01 : f32
    %12 = vector.broadcast %cst_8 : f32 to vector<16x16xf32>
    %13 = arith.mulf %11, %12 : vector<16x16xf32>
    %14 = arith.addf %13, %1 : vector<16x16xf32>
    %cst_9 = arith.constant dense<0xFF800000> : vector<16xf32>
    %15 = vector.multi_reduction <maximumf>, %14, %cst_9 [1] : vector<16x16xf32> to vector<16xf32>
    %16 = vector.shape_cast %15 : vector<16xf32> to vector<16x1xf32>
    %17 = vector.broadcast %16 : vector<16x1xf32> to vector<16x16xf32>
    %18 = arith.subf %14, %17 : vector<16x16xf32>
    %19 = math.exp %18 : vector<16x16xf32>
    %cst_10 = arith.constant dense<0.000000e+00> : vector<16xf32>
    %20 = vector.multi_reduction <add>, %19, %cst_10 [1] : vector<16x16xf32> to vector<16xf32>
    %21 = vector.shape_cast %20 : vector<16xf32> to vector<16x1xf32>
    %22 = tpu.reciprocal %21 {approx = true} : vector<16x1xf32> -> vector<16x1xf32>
    %23 = vector.broadcast %22 : vector<16x1xf32> to vector<16x16xf32>
    %24 = arith.mulf %19, %23 : vector<16x16xf32>
    %cst_11 = arith.constant dense<0.000000e+00> : vector<16x4xf32>
    %25 = tpu.matmul %24, %10, %cst_11 {dimension_numbers = #tpu.dot_dimension_numbers<[1], [0], [0], [1], [0, 0, 1, 1], [], []>} : vector<16x16xf32>, vector<16x4xf32>, vector<16x4xf32> -> vector<16x4xf32>
    %26 = vector.extract_strided_slice %7 {offsets = [0, 0], sizes = [4, 32], strides = [1, 1]} : vector<32x32xf32> to vector<4x32xf32>
    %cst_12 = arith.constant dense<0.000000e+00> : vector<16x32xf32>
    %27 = tpu.matmul %25, %26, %cst_12 {dimension_numbers = #tpu.dot_dimension_numbers<[1], [0], [0], [1], [0, 0, 1, 1], [], []>} : vector<16x4xf32>, vector<4x32xf32>, vector<16x32xf32> -> vector<16x32xf32>
    %28 = vector.extract_strided_slice %4 {offsets = [0, 4], sizes = [16, 4], strides = [1, 1]} : vector<16x32xf32> to vector<16x4xf32>
    %29 = vector.extract_strided_slice %5 {offsets = [0, 4], sizes = [16, 4], strides = [1, 1]} : vector<16x32xf32> to vector<16x4xf32>
    %30 = vector.extract_strided_slice %6 {offsets = [0, 4], sizes = [16, 4], strides = [1, 1]} : vector<16x32xf32> to vector<16x4xf32>
    %cst_13 = arith.constant dense<0.000000e+00> : vector<16x16xf32>
    %31 = tpu.matmul %28, %29, %cst_13 {dimension_numbers = #tpu.dot_dimension_numbers<[1], [1], [0], [0], [0, 0, 1, 0], [], []>} : vector<16x4xf32>, vector<16x4xf32>, vector<16x16xf32> -> vector<16x16xf32>
    %cst_14 = arith.constant 5.000000e-01 : f32
    %32 = vector.broadcast %cst_14 : f32 to vector<16x16xf32>
    %33 = arith.mulf %31, %32 : vector<16x16xf32>
    %34 = arith.addf %33, %1 : vector<16x16xf32>
    %cst_15 = arith.constant dense<0xFF800000> : vector<16xf32>
    %35 = vector.multi_reduction <maximumf>, %34, %cst_15 [1] : vector<16x16xf32> to vector<16xf32>
    %36 = vector.shape_cast %35 : vector<16xf32> to vector<16x1xf32>
    %37 = vector.broadcast %36 : vector<16x1xf32> to vector<16x16xf32>
    %38 = arith.subf %34, %37 : vector<16x16xf32>
    %39 = math.exp %38 : vector<16x16xf32>
    %cst_16 = arith.constant dense<0.000000e+00> : vector<16xf32>
    %40 = vector.multi_reduction <add>, %39, %cst_16 [1] : vector<16x16xf32> to vector<16xf32>
    %41 = vector.shape_cast %40 : vector<16xf32> to vector<16x1xf32>
    %42 = tpu.reciprocal %41 {approx = true} : vector<16x1xf32> -> vector<16x1xf32>
    %43 = vector.broadcast %42 : vector<16x1xf32> to vector<16x16xf32>
    %44 = arith.mulf %39, %43 : vector<16x16xf32>
    %cst_17 = arith.constant dense<0.000000e+00> : vector<16x4xf32>
    %45 = tpu.matmul %44, %30, %cst_17 {dimension_numbers = #tpu.dot_dimension_numbers<[1], [0], [0], [1], [0, 0, 1, 1], [], []>} : vector<16x16xf32>, vector<16x4xf32>, vector<16x4xf32> -> vector<16x4xf32>
    %46 = vector.extract_strided_slice %7 {offsets = [4, 0], sizes = [4, 32], strides = [1, 1]} : vector<32x32xf32> to vector<4x32xf32>
    %cst_18 = arith.constant dense<0.000000e+00> : vector<16x32xf32>
    %47 = tpu.matmul %45, %46, %cst_18 {dimension_numbers = #tpu.dot_dimension_numbers<[1], [0], [0], [1], [0, 0, 1, 1], [], []>} : vector<16x4xf32>, vector<4x32xf32>, vector<16x32xf32> -> vector<16x32xf32>
    %48 = arith.addf %27, %47 : vector<16x32xf32>
    %49 = vector.extract_strided_slice %4 {offsets = [0, 8], sizes = [16, 4], strides = [1, 1]} : vector<16x32xf32> to vector<16x4xf32>
    %50 = vector.extract_strided_slice %5 {offsets = [0, 8], sizes = [16, 4], strides = [1, 1]} : vector<16x32xf32> to vector<16x4xf32>
    %51 = vector.extract_strided_slice %6 {offsets = [0, 8], sizes = [16, 4], strides = [1, 1]} : vector<16x32xf32> to vector<16x4xf32>
    %cst_19 = arith.constant dense<0.000000e+00> : vector<16x16xf32>
    %52 = tpu.matmul %49, %50, %cst_19 {dimension_numbers = #tpu.dot_dimension_numbers<[1], [1], [0], [0], [0, 0, 1, 0], [], []>} : vector<16x4xf32>, vector<16x4xf32>, vector<16x16xf32> -> vector<16x16xf32>
    %cst_20 = arith.constant 5.000000e-01 : f32
    %53 = vector.broadcast %cst_20 : f32 to vector<16x16xf32>
    %54 = arith.mulf %52, %53 : vector<16x16xf32>
    %55 = arith.addf %54, %1 : vector<16x16xf32>
    %cst_21 = arith.constant dense<0xFF800000> : vector<16xf32>
    %56 = vector.multi_reduction <maximumf>, %55, %cst_21 [1] : vector<16x16xf32> to vector<16xf32>
    %57 = vector.shape_cast %56 : vector<16xf32> to vector<16x1xf32>
    %58 = vector.broadcast %57 : vector<16x1xf32> to vector<16x16xf32>
    %59 = arith.subf %55, %58 : vector<16x16xf32>
    %60 = math.exp %59 : vector<16x16xf32>
    %cst_22 = arith.constant dense<0.000000e+00> : vector<16xf32>
    %61 = vector.multi_reduction <add>, %60, %cst_22 [1] : vector<16x16xf32> to vector<16xf32>
    %62 = vector.shape_cast %61 : vector<16xf32> to vector<16x1xf32>
    %63 = tpu.reciprocal %62 {approx = true} : vector<16x1xf32> -> vector<16x1xf32>
    %64 = vector.broadcast %63 : vector<16x1xf32> to vector<16x16xf32>
    %65 = arith.mulf %60, %64 : vector<16x16xf32>
    %cst_23 = arith.constant dense<0.000000e+00> : vector<16x4xf32>
    %66 = tpu.matmul %65, %51, %cst_23 {dimension_numbers = #tpu.dot_dimension_numbers<[1], [0], [0], [1], [0, 0, 1, 1], [], []>} : vector<16x16xf32>, vector<16x4xf32>, vector<16x4xf32> -> vector<16x4xf32>
    %67 = vector.extract_strided_slice %7 {offsets = [8, 0], sizes = [4, 32], strides = [1, 1]} : vector<32x32xf32> to vector<4x32xf32>
    %cst_24 = arith.constant dense<0.000000e+00> : vector<16x32xf32>
    %68 = tpu.matmul %66, %67, %cst_24 {dimension_numbers = #tpu.dot_dimension_numbers<[1], [0], [0], [1], [0, 0, 1, 1], [], []>} : vector<16x4xf32>, vector<4x32xf32>, vector<16x32xf32> -> vector<16x32xf32>
    %69 = arith.addf %48, %68 : vector<16x32xf32>
    %70 = vector.extract_strided_slice %4 {offsets = [0, 12], sizes = [16, 4], strides = [1, 1]} : vector<16x32xf32> to vector<16x4xf32>
    %71 = vector.extract_strided_slice %5 {offsets = [0, 12], sizes = [16, 4], strides = [1, 1]} : vector<16x32xf32> to vector<16x4xf32>
    %72 = vector.extract_strided_slice %6 {offsets = [0, 12], sizes = [16, 4], strides = [1, 1]} : vector<16x32xf32> to vector<16x4xf32>
    %cst_25 = arith.constant dense<0.000000e+00> : vector<16x16xf32>
    %73 = tpu.matmul %70, %71, %cst_25 {dimension_numbers = #tpu.dot_dimension_numbers<[1], [1], [0], [0], [0, 0, 1, 0], [], []>} : vector<16x4xf32>, vector<16x4xf32>, vector<16x16xf32> -> vector<16x16xf32>
    %cst_26 = arith.constant 5.000000e-01 : f32
    %74 = vector.broadcast %cst_26 : f32 to vector<16x16xf32>
    %75 = arith.mulf %73, %74 : vector<16x16xf32>
    %76 = arith.addf %75, %1 : vector<16x16xf32>
    %cst_27 = arith.constant dense<0xFF800000> : vector<16xf32>
    %77 = vector.multi_reduction <maximumf>, %76, %cst_27 [1] : vector<16x16xf32> to vector<16xf32>
    %78 = vector.shape_cast %77 : vector<16xf32> to vector<16x1xf32>
    %79 = vector.broadcast %78 : vector<16x1xf32> to vector<16x16xf32>
    %80 = arith.subf %76, %79 : vector<16x16xf32>
    %81 = math.exp %80 : vector<16x16xf32>
    %cst_28 = arith.constant dense<0.000000e+00> : vector<16xf32>
    %82 = vector.multi_reduction <add>, %81, %cst_28 [1] : vector<16x16xf32> to vector<16xf32>
    %83 = vector.shape_cast %82 : vector<16xf32> to vector<16x1xf32>
    %84 = tpu.reciprocal %83 {approx = true} : vector<16x1xf32> -> vector<16x1xf32>
    %85 = vector.broadcast %84 : vector<16x1xf32> to vector<16x16xf32>
    %86 = arith.mulf %81, %85 : vector<16x16xf32>
    %cst_29 = arith.constant dense<0.000000e+00> : vector<16x4xf32>
    %87 = tpu.matmul %86, %72, %cst_29 {dimension_numbers = #tpu.dot_dimension_numbers<[1], [0], [0], [1], [0, 0, 1, 1], [], []>} : vector<16x16xf32>, vector<16x4xf32>, vector<16x4xf32> -> vector<16x4xf32>
    %88 = vector.extract_strided_slice %7 {offsets = [12, 0], sizes = [4, 32], strides = [1, 1]} : vector<32x32xf32> to vector<4x32xf32>
    %cst_30 = arith.constant dense<0.000000e+00> : vector<16x32xf32>
    %89 = tpu.matmul %87, %88, %cst_30 {dimension_numbers = #tpu.dot_dimension_numbers<[1], [0], [0], [1], [0, 0, 1, 1], [], []>} : vector<16x4xf32>, vector<4x32xf32>, vector<16x32xf32> -> vector<16x32xf32>
    %90 = arith.addf %69, %89 : vector<16x32xf32>
    %91 = vector.extract_strided_slice %4 {offsets = [0, 16], sizes = [16, 4], strides = [1, 1]} : vector<16x32xf32> to vector<16x4xf32>
    %92 = vector.extract_strided_slice %5 {offsets = [0, 16], sizes = [16, 4], strides = [1, 1]} : vector<16x32xf32> to vector<16x4xf32>
    %93 = vector.extract_strided_slice %6 {offsets = [0, 16], sizes = [16, 4], strides = [1, 1]} : vector<16x32xf32> to vector<16x4xf32>
    %cst_31 = arith.constant dense<0.000000e+00> : vector<16x16xf32>
    %94 = tpu.matmul %91, %92, %cst_31 {dimension_numbers = #tpu.dot_dimension_numbers<[1], [1], [0], [0], [0, 0, 1, 0], [], []>} : vector<16x4xf32>, vector<16x4xf32>, vector<16x16xf32> -> vector<16x16xf32>
    %cst_32 = arith.constant 5.000000e-01 : f32
    %95 = vector.broadcast %cst_32 : f32 to vector<16x16xf32>
    %96 = arith.mulf %94, %95 : vector<16x16xf32>
    %97 = arith.addf %96, %1 : vector<16x16xf32>
    %cst_33 = arith.constant dense<0xFF800000> : vector<16xf32>
    %98 = vector.multi_reduction <maximumf>, %97, %cst_33 [1] : vector<16x16xf32> to vector<16xf32>
    %99 = vector.shape_cast %98 : vector<16xf32> to vector<16x1xf32>
    %100 = vector.broadcast %99 : vector<16x1xf32> to vector<16x16xf32>
    %101 = arith.subf %97, %100 : vector<16x16xf32>
    %102 = math.exp %101 : vector<16x16xf32>
    %cst_34 = arith.constant dense<0.000000e+00> : vector<16xf32>
    %103 = vector.multi_reduction <add>, %102, %cst_34 [1] : vector<16x16xf32> to vector<16xf32>
    %104 = vector.shape_cast %103 : vector<16xf32> to vector<16x1xf32>
    %105 = tpu.reciprocal %104 {approx = true} : vector<16x1xf32> -> vector<16x1xf32>
    %106 = vector.broadcast %105 : vector<16x1xf32> to vector<16x16xf32>
    %107 = arith.mulf %102, %106 : vector<16x16xf32>
    %cst_35 = arith.constant dense<0.000000e+00> : vector<16x4xf32>
    %108 = tpu.matmul %107, %93, %cst_35 {dimension_numbers = #tpu.dot_dimension_numbers<[1], [0], [0], [1], [0, 0, 1, 1], [], []>} : vector<16x16xf32>, vector<16x4xf32>, vector<16x4xf32> -> vector<16x4xf32>
    %109 = vector.extract_strided_slice %7 {offsets = [16, 0], sizes = [4, 32], strides = [1, 1]} : vector<32x32xf32> to vector<4x32xf32>
    %cst_36 = arith.constant dense<0.000000e+00> : vector<16x32xf32>
    %110 = tpu.matmul %108, %109, %cst_36 {dimension_numbers = #tpu.dot_dimension_numbers<[1], [0], [0], [1], [0, 0, 1, 1], [], []>} : vector<16x4xf32>, vector<4x32xf32>, vector<16x32xf32> -> vector<16x32xf32>
    %111 = arith.addf %90, %110 : vector<16x32xf32>
    %112 = vector.extract_strided_slice %4 {offsets = [0, 20], sizes = [16, 4], strides = [1, 1]} : vector<16x32xf32> to vector<16x4xf32>
    %113 = vector.extract_strided_slice %5 {offsets = [0, 20], sizes = [16, 4], strides = [1, 1]} : vector<16x32xf32> to vector<16x4xf32>
    %114 = vector.extract_strided_slice %6 {offsets = [0, 20], sizes = [16, 4], strides = [1, 1]} : vector<16x32xf32> to vector<16x4xf32>
    %cst_37 = arith.constant dense<0.000000e+00> : vector<16x16xf32>
    %115 = tpu.matmul %112, %113, %cst_37 {dimension_numbers = #tpu.dot_dimension_numbers<[1], [1], [0], [0], [0, 0, 1, 0], [], []>} : vector<16x4xf32>, vector<16x4xf32>, vector<16x16xf32> -> vector<16x16xf32>
    %cst_38 = arith.constant 5.000000e-01 : f32
    %116 = vector.broadcast %cst_38 : f32 to vector<16x16xf32>
    %117 = arith.mulf %115, %116 : vector<16x16xf32>
    %118 = arith.addf %117, %1 : vector<16x16xf32>
    %cst_39 = arith.constant dense<0xFF800000> : vector<16xf32>
    %119 = vector.multi_reduction <maximumf>, %118, %cst_39 [1] : vector<16x16xf32> to vector<16xf32>
    %120 = vector.shape_cast %119 : vector<16xf32> to vector<16x1xf32>
    %121 = vector.broadcast %120 : vector<16x1xf32> to vector<16x16xf32>
    %122 = arith.subf %118, %121 : vector<16x16xf32>
    %123 = math.exp %122 : vector<16x16xf32>
    %cst_40 = arith.constant dense<0.000000e+00> : vector<16xf32>
    %124 = vector.multi_reduction <add>, %123, %cst_40 [1] : vector<16x16xf32> to vector<16xf32>
    %125 = vector.shape_cast %124 : vector<16xf32> to vector<16x1xf32>
    %126 = tpu.reciprocal %125 {approx = true} : vector<16x1xf32> -> vector<16x1xf32>
    %127 = vector.broadcast %126 : vector<16x1xf32> to vector<16x16xf32>
    %128 = arith.mulf %123, %127 : vector<16x16xf32>
    %cst_41 = arith.constant dense<0.000000e+00> : vector<16x4xf32>
    %129 = tpu.matmul %128, %114, %cst_41 {dimension_numbers = #tpu.dot_dimension_numbers<[1], [0], [0], [1], [0, 0, 1, 1], [], []>} : vector<16x16xf32>, vector<16x4xf32>, vector<16x4xf32> -> vector<16x4xf32>
    %130 = vector.extract_strided_slice %7 {offsets = [20, 0], sizes = [4, 32], strides = [1, 1]} : vector<32x32xf32> to vector<4x32xf32>
    %cst_42 = arith.constant dense<0.000000e+00> : vector<16x32xf32>
    %131 = tpu.matmul %129, %130, %cst_42 {dimension_numbers = #tpu.dot_dimension_numbers<[1], [0], [0], [1], [0, 0, 1, 1], [], []>} : vector<16x4xf32>, vector<4x32xf32>, vector<16x32xf32> -> vector<16x32xf32>
    %132 = arith.addf %111, %131 : vector<16x32xf32>
    %133 = vector.extract_strided_slice %4 {offsets = [0, 24], sizes = [16, 4], strides = [1, 1]} : vector<16x32xf32> to vector<16x4xf32>
    %134 = vector.extract_strided_slice %5 {offsets = [0, 24], sizes = [16, 4], strides = [1, 1]} : vector<16x32xf32> to vector<16x4xf32>
    %135 = vector.extract_strided_slice %6 {offsets = [0, 24], sizes = [16, 4], strides = [1, 1]} : vector<16x32xf32> to vector<16x4xf32>
    %cst_43 = arith.constant dense<0.000000e+00> : vector<16x16xf32>
    %136 = tpu.matmul %133, %134, %cst_43 {dimension_numbers = #tpu.dot_dimension_numbers<[1], [1], [0], [0], [0, 0, 1, 0], [], []>} : vector<16x4xf32>, vector<16x4xf32>, vector<16x16xf32> -> vector<16x16xf32>
    %cst_44 = arith.constant 5.000000e-01 : f32
    %137 = vector.broadcast %cst_44 : f32 to vector<16x16xf32>
    %138 = arith.mulf %136, %137 : vector<16x16xf32>
    %139 = arith.addf %138, %1 : vector<16x16xf32>
    %cst_45 = arith.constant dense<0xFF800000> : vector<16xf32>
    %140 = vector.multi_reduction <maximumf>, %139, %cst_45 [1] : vector<16x16xf32> to vector<16xf32>
    %141 = vector.shape_cast %140 : vector<16xf32> to vector<16x1xf32>
    %142 = vector.broadcast %141 : vector<16x1xf32> to vector<16x16xf32>
    %143 = arith.subf %139, %142 : vector<16x16xf32>
    %144 = math.exp %143 : vector<16x16xf32>
    %cst_46 = arith.constant dense<0.000000e+00> : vector<16xf32>
    %145 = vector.multi_reduction <add>, %144, %cst_46 [1] : vector<16x16xf32> to vector<16xf32>
    %146 = vector.shape_cast %145 : vector<16xf32> to vector<16x1xf32>
    %147 = tpu.reciprocal %146 {approx = true} : vector<16x1xf32> -> vector<16x1xf32>
    %148 = vector.broadcast %147 : vector<16x1xf32> to vector<16x16xf32>
    %149 = arith.mulf %144, %148 : vector<16x16xf32>
    %cst_47 = arith.constant dense<0.000000e+00> : vector<16x4xf32>
    %150 = tpu.matmul %149, %135, %cst_47 {dimension_numbers = #tpu.dot_dimension_numbers<[1], [0], [0], [1], [0, 0, 1, 1], [], []>} : vector<16x16xf32>, vector<16x4xf32>, vector<16x4xf32> -> vector<16x4xf32>
    %151 = vector.extract_strided_slice %7 {offsets = [24, 0], sizes = [4, 32], strides = [1, 1]} : vector<32x32xf32> to vector<4x32xf32>
    %cst_48 = arith.constant dense<0.000000e+00> : vector<16x32xf32>
    %152 = tpu.matmul %150, %151, %cst_48 {dimension_numbers = #tpu.dot_dimension_numbers<[1], [0], [0], [1], [0, 0, 1, 1], [], []>} : vector<16x4xf32>, vector<4x32xf32>, vector<16x32xf32> -> vector<16x32xf32>
    %153 = arith.addf %132, %152 : vector<16x32xf32>
    %154 = vector.extract_strided_slice %4 {offsets = [0, 28], sizes = [16, 4], strides = [1, 1]} : vector<16x32xf32> to vector<16x4xf32>
    %155 = vector.extract_strided_slice %5 {offsets = [0, 28], sizes = [16, 4], strides = [1, 1]} : vector<16x32xf32> to vector<16x4xf32>
    %156 = vector.extract_strided_slice %6 {offsets = [0, 28], sizes = [16, 4], strides = [1, 1]} : vector<16x32xf32> to vector<16x4xf32>
    %cst_49 = arith.constant dense<0.000000e+00> : vector<16x16xf32>
    %157 = tpu.matmul %154, %155, %cst_49 {dimension_numbers = #tpu.dot_dimension_numbers<[1], [1], [0], [0], [0, 0, 1, 0], [], []>} : vector<16x4xf32>, vector<16x4xf32>, vector<16x16xf32> -> vector<16x16xf32>
    %cst_50 = arith.constant 5.000000e-01 : f32
    %158 = vector.broadcast %cst_50 : f32 to vector<16x16xf32>
    %159 = arith.mulf %157, %158 : vector<16x16xf32>
    %160 = arith.addf %159, %1 : vector<16x16xf32>
    %cst_51 = arith.constant dense<0xFF800000> : vector<16xf32>
    %161 = vector.multi_reduction <maximumf>, %160, %cst_51 [1] : vector<16x16xf32> to vector<16xf32>
    %162 = vector.shape_cast %161 : vector<16xf32> to vector<16x1xf32>
    %163 = vector.broadcast %162 : vector<16x1xf32> to vector<16x16xf32>
    %164 = arith.subf %160, %163 : vector<16x16xf32>
    %165 = math.exp %164 : vector<16x16xf32>
    %cst_52 = arith.constant dense<0.000000e+00> : vector<16xf32>
    %166 = vector.multi_reduction <add>, %165, %cst_52 [1] : vector<16x16xf32> to vector<16xf32>
    %167 = vector.shape_cast %166 : vector<16xf32> to vector<16x1xf32>
    %168 = tpu.reciprocal %167 {approx = true} : vector<16x1xf32> -> vector<16x1xf32>
    %169 = vector.broadcast %168 : vector<16x1xf32> to vector<16x16xf32>
    %170 = arith.mulf %165, %169 : vector<16x16xf32>
    %cst_53 = arith.constant dense<0.000000e+00> : vector<16x4xf32>
    %171 = tpu.matmul %170, %156, %cst_53 {dimension_numbers = #tpu.dot_dimension_numbers<[1], [0], [0], [1], [0, 0, 1, 1], [], []>} : vector<16x16xf32>, vector<16x4xf32>, vector<16x4xf32> -> vector<16x4xf32>
    %172 = vector.extract_strided_slice %7 {offsets = [28, 0], sizes = [4, 32], strides = [1, 1]} : vector<32x32xf32> to vector<4x32xf32>
    %cst_54 = arith.constant dense<0.000000e+00> : vector<16x32xf32>
    %173 = tpu.matmul %171, %172, %cst_54 {dimension_numbers = #tpu.dot_dimension_numbers<[1], [0], [0], [1], [0, 0, 1, 1], [], []>} : vector<16x4xf32>, vector<4x32xf32>, vector<16x32xf32> -> vector<16x32xf32>
    %174 = arith.addf %153, %173 : vector<16x32xf32>
    %175 = arith.addf %0, %174 : vector<16x32xf32>
    %c0_55 = arith.constant 0 : index
    %c0_56 = arith.constant 0 : index
    %176 = vector.load %arg8[%c0_55, %c0_56] : memref<1x32xf32, #tpu.memory_space<vmem>>, vector<1x32xf32>
    %c0_57 = arith.constant 0 : index
    %c0_58 = arith.constant 0 : index
    %177 = vector.load %arg9[%c0_57, %c0_58] : memref<1x32xf32, #tpu.memory_space<vmem>>, vector<1x32xf32>
    %cst_59 = arith.constant dense<0.000000e+00> : vector<16xf32>
    %178 = vector.multi_reduction <add>, %175, %cst_59 [1] : vector<16x32xf32> to vector<16xf32>
    %179 = vector.shape_cast %178 : vector<16xf32> to vector<16x1xf32>
    %cst_60 = arith.constant 3.200000e+01 : f32
    %180 = vector.broadcast %cst_60 : f32 to vector<16x1xf32>
    %181 = arith.divf %179, %180 : vector<16x1xf32>
    %182 = vector.broadcast %181 : vector<16x1xf32> to vector<16x32xf32>
    %183 = arith.subf %175, %182 : vector<16x32xf32>
    %184 = arith.mulf %183, %183 : vector<16x32xf32>
    %cst_61 = arith.constant dense<0.000000e+00> : vector<16xf32>
    %185 = vector.multi_reduction <add>, %184, %cst_61 [1] : vector<16x32xf32> to vector<16xf32>
    %186 = vector.shape_cast %185 : vector<16xf32> to vector<16x1xf32>
    %cst_62 = arith.constant 3.200000e+01 : f32
    %187 = vector.broadcast %cst_62 : f32 to vector<16x1xf32>
    %188 = arith.divf %186, %187 : vector<16x1xf32>
    %189 = vector.broadcast %181 : vector<16x1xf32> to vector<16x32xf32>
    %190 = arith.subf %175, %189 : vector<16x32xf32>
    %cst_63 = arith.constant 9.99999974E-6 : f32
    %191 = vector.broadcast %cst_63 : f32 to vector<16x1xf32>
    %192 = arith.addf %188, %191 : vector<16x1xf32>
    %193 = math.rsqrt %192 : vector<16x1xf32>
    %194 = vector.broadcast %193 : vector<16x1xf32> to vector<16x32xf32>
    %195 = arith.mulf %190, %194 : vector<16x32xf32>
    %196 = vector.broadcast %176 : vector<1x32xf32> to vector<16x32xf32>
    %197 = arith.mulf %195, %196 : vector<16x32xf32>
    %198 = vector.broadcast %177 : vector<1x32xf32> to vector<16x32xf32>
    %199 = arith.addf %197, %198 : vector<16x32xf32>
    %c0_64 = arith.constant 0 : index
    %c0_65 = arith.constant 0 : index
    %200 = vector.load %arg4[%c0_64, %c0_65] : memref<32x32xf32, #tpu.memory_space<vmem>>, vector<32x32xf32>
    %cst_66 = arith.constant dense<0.000000e+00> : vector<16x32xf32>
    %201 = tpu.matmul %199, %200, %cst_66 {dimension_numbers = #tpu.dot_dimension_numbers<[1], [0], [0], [1], [0, 0, 1, 1], [], []>} : vector<16x32xf32>, vector<32x32xf32>, vector<16x32xf32> -> vector<16x32xf32>
    %c0_67 = arith.constant 0 : index
    %c0_68 = arith.constant 0 : index
    %202 = vector.load %arg5[%c0_67, %c0_68] : memref<1x32xf32, #tpu.memory_space<vmem>>, vector<1x32xf32>
    %203 = vector.broadcast %202 : vector<1x32xf32> to vector<16x32xf32>
    %204 = arith.addf %201, %203 : vector<16x32xf32>
    %cst_69 = arith.constant 5.000000e-01 : f32
    %205 = vector.broadcast %cst_69 : f32 to vector<16x32xf32>
    %206 = arith.mulf %204, %205 : vector<16x32xf32>
    %cst_70 = arith.constant 0.707106769 : f32
    %207 = vector.broadcast %cst_70 : f32 to vector<16x32xf32>
    %208 = arith.mulf %204, %207 : vector<16x32xf32>
    %209 = math.erf %208 : vector<16x32xf32>
    %cst_71 = arith.constant 1.000000e+00 : f32
    %210 = vector.broadcast %cst_71 : f32 to vector<16x32xf32>
    %211 = arith.addf %210, %209 : vector<16x32xf32>
    %212 = arith.mulf %206, %211 : vector<16x32xf32>
    %c0_72 = arith.constant 0 : index
    %c0_73 = arith.constant 0 : index
    %213 = vector.load %arg6[%c0_72, %c0_73] : memref<32x32xf32, #tpu.memory_space<vmem>>, vector<32x32xf32>
    %cst_74 = arith.constant dense<0.000000e+00> : vector<16x32xf32>
    %214 = tpu.matmul %212, %213, %cst_74 {dimension_numbers = #tpu.dot_dimension_numbers<[1], [0], [0], [1], [0, 0, 1, 1], [], []>} : vector<16x32xf32>, vector<32x32xf32>, vector<16x32xf32> -> vector<16x32xf32>
    %c0_75 = arith.constant 0 : index
    %c0_76 = arith.constant 0 : index
    %215 = vector.load %arg7[%c0_75, %c0_76] : memref<1x32xf32, #tpu.memory_space<vmem>>, vector<1x32xf32>
    %216 = vector.broadcast %215 : vector<1x32xf32> to vector<16x32xf32>
    %217 = arith.addf %214, %216 : vector<16x32xf32>
    %218 = arith.addf %217, %199 : vector<16x32xf32>
    %c0_77 = arith.constant 0 : index
    %c0_78 = arith.constant 0 : index
    %219 = vector.load %arg10[%c0_77, %c0_78] : memref<1x32xf32, #tpu.memory_space<vmem>>, vector<1x32xf32>
    %c0_79 = arith.constant 0 : index
    %c0_80 = arith.constant 0 : index
    %220 = vector.load %arg11[%c0_79, %c0_80] : memref<1x32xf32, #tpu.memory_space<vmem>>, vector<1x32xf32>
    %cst_81 = arith.constant dense<0.000000e+00> : vector<16xf32>
    %221 = vector.multi_reduction <add>, %218, %cst_81 [1] : vector<16x32xf32> to vector<16xf32>
    %222 = vector.shape_cast %221 : vector<16xf32> to vector<16x1xf32>
    %cst_82 = arith.constant 3.200000e+01 : f32
    %223 = vector.broadcast %cst_82 : f32 to vector<16x1xf32>
    %224 = arith.divf %222, %223 : vector<16x1xf32>
    %225 = vector.broadcast %224 : vector<16x1xf32> to vector<16x32xf32>
    %226 = arith.subf %218, %225 : vector<16x32xf32>
    %227 = arith.mulf %226, %226 : vector<16x32xf32>
    %cst_83 = arith.constant dense<0.000000e+00> : vector<16xf32>
    %228 = vector.multi_reduction <add>, %227, %cst_83 [1] : vector<16x32xf32> to vector<16xf32>
    %229 = vector.shape_cast %228 : vector<16xf32> to vector<16x1xf32>
    %cst_84 = arith.constant 3.200000e+01 : f32
    %230 = vector.broadcast %cst_84 : f32 to vector<16x1xf32>
    %231 = arith.divf %229, %230 : vector<16x1xf32>
    %232 = vector.broadcast %224 : vector<16x1xf32> to vector<16x32xf32>
    %233 = arith.subf %218, %232 : vector<16x32xf32>
    %cst_85 = arith.constant 9.99999974E-6 : f32
    %234 = vector.broadcast %cst_85 : f32 to vector<16x1xf32>
    %235 = arith.addf %231, %234 : vector<16x1xf32>
    %236 = math.rsqrt %235 : vector<16x1xf32>
    %237 = vector.broadcast %236 : vector<16x1xf32> to vector<16x32xf32>
    %238 = arith.mulf %233, %237 : vector<16x32xf32>
    %239 = vector.broadcast %219 : vector<1x32xf32> to vector<16x32xf32>
    %240 = arith.mulf %238, %239 : vector<16x32xf32>
    %241 = vector.broadcast %220 : vector<1x32xf32> to vector<16x32xf32>
    %242 = arith.addf %240, %241 : vector<16x32xf32>
    %c0_86 = arith.constant 0 : index
    %c0_87 = arith.constant 0 : index
    %243 = vector.load %arg12[%c0_86, %c0_87] : memref<16x32xf32, #tpu.memory_space<vmem>>, vector<16x32xf32>
    tpu.vector_store %arg12[%c0_86, %c0_87], %242 {strides = array<i32>} : memref<16x32xf32, #tpu.memory_space<vmem>>, vector<16x32xf32>,
    return
  }
}

</mosaic_0001>

<llo_original>
// kernel: tpu_custom_call.1
$region0: #{tpu_custom_call.1}
  #allocation0 [shape = 'u32[]', space=smem, size = 0x4, offset = 0x4, fixed_abs, tag = 'smem constant byte address 0x4 - core index']
  #allocation1 [shape = 'u32[72,128]{1,0:T(1,128)}', space=vmem, size = 0x9000, scoped, tag = 'internal scratch']
  %s0 = inlined_call_operand.hbm [shape: f32[16,32], index: 0, kind: input, shape index: {}]
  %s1 = inlined_call_operand.hbm [shape: f32[16,16], index: 1, kind: input, shape index: {}]
  %s2 = inlined_call_operand.hbm [shape: f32[32,96], index: 2, kind: input, shape index: {}]
  %s3 = inlined_call_operand.hbm [shape: f32[32,32], index: 3, kind: input, shape index: {}]
  %s4 = inlined_call_operand.hbm [shape: f32[32,32], index: 4, kind: input, shape index: {}]
  %s5 = inlined_call_operand.vmem [shape: f32[1,32], index: 5, kind: input, shape index: {}]
  %s6 = inlined_call_operand.hbm [shape: f32[32,32], index: 6, kind: input, shape index: {}]
  %s7 = inlined_call_operand.vmem [shape: f32[1,32], index: 7, kind: input, shape index: {}]
  %s8 = inlined_call_operand.vmem [shape: f32[1,32], index: 8, kind: input, shape index: {}]
  %s9 = inlined_call_operand.vmem [shape: f32[1,32], index: 9, kind: input, shape index: {}]
  %s10 = inlined_call_operand.vmem [shape: f32[1,32], index: 10, kind: input, shape index: {}]
  %s11 = inlined_call_operand.vmem [shape: f32[1,32], index: 11, kind: input, shape index: {}]
  %s12 = inlined_call_operand.hbm [shape: f32[16,32], index: 12, kind: output, shape index: {}]
  %s13 = sld [smem:[#allocation0]]
  $region82: #{tpu_custom_call.1} parent=0
    _
  %s15 = ssub.s32 1, %s13
  %s16 = scalar_select 0, %s15, %s13
  $region1: #{tpu_custom_call.1} parent=0
    #allocation2 [shape = 'u8[8192]{0}', space=vmem, size = 0x2000, scoped, tag = 'input window, operand 0, single buffered']
    #allocation3 [shape = 's32[1]{0}', space=sflag, size = 0x4, scoped, tag = 'scoped memory for tpu_custom_call.1']
    #allocation4 [shape = 's32[1]{0}', space=sflag, size = 0x4, scoped, tag = 'scoped memory for tpu_custom_call.1']
    #allocation5 [shape = 'u8[8192]{0}', space=vmem, size = 0x2000, scoped, tag = 'input window, operand 1, single buffered']
    #allocation6 [shape = 's32[1]{0}', space=sflag, size = 0x4, scoped, tag = 'scoped memory for tpu_custom_call.1']
    #allocation7 [shape = 'u8[16384]{0}', space=vmem, size = 0x4000, scoped, tag = 'input window, operand 2, single buffered']
    #allocation8 [shape = 'u8[16384]{0}', space=vmem, size = 0x4000, scoped, tag = 'input window, operand 3, single buffered']
    #allocation9 [shape = 's32[1]{0}', space=sflag, size = 0x4, scoped, tag = 'scoped memory for tpu_custom_call.1']
    #allocation10 [shape = 'u8[16384]{0}', space=vmem, size = 0x4000, scoped, tag = 'input window, operand 4, single buffered']
    #allocation11 [shape = 'u8[16384]{0}', space=vmem, size = 0x4000, scoped, tag = 'input window, operand 6, single buffered']
    #allocation12 [shape = 's32[1]{0}', space=sflag, size = 0x4, scoped, tag = 'scoped memory for tpu_custom_call.1']
    #allocation13 [shape = 'u8[8192]{0}', space=vmem, size = 0x2000, scoped, tag = 'output window, operand 0, single buffered']
    %17 = vsyncpa [#allocation3], 0
    %18 = vsyncpa [#allocation6], 0
    %19 = vsyncpa [#allocation9], 0
    %20 = vsyncpa [#allocation12], 0
    %21 = vsyncpa [#allocation4], 0
    // Predicated region
    $region2: #{tpu_custom_call.1} parent=1 // pred_check
      _
    $region3: #{tpu_custom_call.1} parent=1 // pred_check_branch
      %23 = sbr.rel (0) target = $region5
    $region4: #{tpu_custom_call.1} parent=1 // pred_region
      %25 = vsyncadd [#allocation3], 0
      %s26 = sshll.u32 %s0, 4
      %s27 = int_to_ptr.hbm [resolvable:$true] %s26
      %s28 = sshll.u32 [#allocation2], 4
      %s29 = int_to_ptr.vmem [resolvable:$true] %s28
      %34 = dma.hbm_to_vmem [thread:$0]  %s27, 256, %s29, [#allocation3], 128, 128, 8
    $region5: #{tpu_custom_call.1} parent=1 // pred_fallthru
      _
    // Predicated region
    $region6: #{tpu_custom_call.1} parent=1 // pred_check
      _
    $region7: #{tpu_custom_call.1} parent=1 // pred_check_branch
      %36 = sbr.rel (0) target = $region9
    $region8: #{tpu_custom_call.1} parent=1 // pred_region
      %38 = vsyncadd [#allocation6], 0
      %s39 = sshll.u32 %s1, 4
      %s40 = int_to_ptr.hbm [resolvable:$true] %s39
      %s41 = sshll.u32 [#allocation5], 4
      %s42 = int_to_ptr.vmem [resolvable:$true] %s41
      %47 = dma.hbm_to_vmem [thread:$0]  %s40, 256, %s42, [#allocation6], 128, 128, 8
    $region9: #{tpu_custom_call.1} parent=1 // pred_fallthru
      _
    // Predicated region
    $region10: #{tpu_custom_call.1} parent=1 // pred_check
      _
    $region11: #{tpu_custom_call.1} parent=1 // pred_check_branch
      %49 = sbr.rel (0) target = $region13
    $region12: #{tpu_custom_call.1} parent=1 // pred_region
      %51 = vsyncadd [#allocation6], 0
      %s52 = sshll.u32 %s2, 4
      %s53 = int_to_ptr.hbm [resolvable:$true] %s52
      %s54 = sshll.u32 [#allocation7], 4
      %s55 = int_to_ptr.vmem [resolvable:$true] %s54
      %60 = dma.hbm_to_vmem [thread:$0]  %s53, 512, %s55, [#allocation6], 128, 128, 8
    $region13: #{tpu_custom_call.1} parent=1 // pred_fallthru
      _
    // Predicated region
    $region14: #{tpu_custom_call.1} parent=1 // pred_check
      _
    $region15: #{tpu_custom_call.1} parent=1 // pred_check_branch
      %62 = sbr.rel (0) target = $region17
    $region16: #{tpu_custom_call.1} parent=1 // pred_region
      %64 = vsyncadd [#allocation9], 0
      %s65 = sshll.u32 %s3, 4
      %s66 = int_to_ptr.hbm [resolvable:$true] %s65
      %s67 = sshll.u32 [#allocation8], 4
      %s68 = int_to_ptr.vmem [resolvable:$true] %s67
      %73 = dma.hbm_to_vmem [thread:$0]  %s66, 512, %s68, [#allocation9], 128, 128, 8
    $region17: #{tpu_custom_call.1} parent=1 // pred_fallthru
      _
    // Predicated region
    $region18: #{tpu_custom_call.1} parent=1 // pred_check
      _
    $region19: #{tpu_custom_call.1} parent=1 // pred_check_branch
      %75 = sbr.rel (0) target = $region21
    $region20: #{tpu_custom_call.1} parent=1 // pred_region
      %77 = vsyncadd [#allocation9], 0
      %s78 = sshll.u32 %s4, 4
      %s79 = int_to_ptr.hbm [resolvable:$true] %s78
      %s80 = sshll.u32 [#allocation10], 4
      %s81 = int_to_ptr.vmem [resolvable:$true] %s80
      %86 = dma.hbm_to_vmem [thread:$0]  %s79, 512, %s81, [#allocation9], 128, 128, 8
    $region21: #{tpu_custom_call.1} parent=1 // pred_fallthru
      _
    // Predicated region
    $region22: #{tpu_custom_call.1} parent=1 // pred_check
      _
    $region23: #{tpu_custom_call.1} parent=1 // pred_check_branch
      %88 = sbr.rel (0) target = $region25
    $region24: #{tpu_custom_call.1} parent=1 // pred_region
      _
    $region25: #{tpu_custom_call.1} parent=1 // pred_fallthru
      _
    // Predicated region
    $region26: #{tpu_custom_call.1} parent=1 // pred_check
      _
    $region27: #{tpu_custom_call.1} parent=1 // pred_check_branch
      %90 = sbr.rel (0) target = $region29
    $region28: #{tpu_custom_call.1} parent=1 // pred_region
      %92 = vsyncadd [#allocation12], 0
      %s93 = sshll.u32 %s6, 4
      %s94 = int_to_ptr.hbm [resolvable:$true] %s93
      %s95 = sshll.u32 [#allocation11], 4
      %s96 = int_to_ptr.vmem [resolvable:$true] %s95
      %101 = dma.hbm_to_vmem [thread:$0]  %s94, 512, %s96, [#allocation12], 128, 128, 8
    $region29: #{tpu_custom_call.1} parent=1 // pred_fallthru
      _
    // Predicated region
    $region30: #{tpu_custom_call.1} parent=1 // pred_check
      _
    $region31: #{tpu_custom_call.1} parent=1 // pred_check_branch
      %103 = sbr.rel (0) target = $region33
    $region32: #{tpu_custom_call.1} parent=1 // pred_region
      _
    $region33: #{tpu_custom_call.1} parent=1 // pred_fallthru
      _
    // Predicated region
    $region34: #{tpu_custom_call.1} parent=1 // pred_check
      _
    $region35: #{tpu_custom_call.1} parent=1 // pred_check_branch
      %105 = sbr.rel (0) target = $region37
    $region36: #{tpu_custom_call.1} parent=1 // pred_region
      _
    $region37: #{tpu_custom_call.1} parent=1 // pred_fallthru
      _
    // Predicated region
    $region38: #{tpu_custom_call.1} parent=1 // pred_check
      _
    $region39: #{tpu_custom_call.1} parent=1 // pred_check_branch
      %107 = sbr.rel (0) target = $region41
    $region40: #{tpu_custom_call.1} parent=1 // pred_region
      _
    $region41: #{tpu_custom_call.1} parent=1 // pred_fallthru
      _
    // Predicated region
    $region42: #{tpu_custom_call.1} parent=1 // pred_check
      _
    $region43: #{tpu_custom_call.1} parent=1 // pred_check_branch
      %109 = sbr.rel (0) target = $region45
    $region44: #{tpu_custom_call.1} parent=1 // pred_region
      _
    $region45: #{tpu_custom_call.1} parent=1 // pred_fallthru
      _
    // Predicated region
    $region46: #{tpu_custom_call.1} parent=1 // pred_check
      _
    $region47: #{tpu_custom_call.1} parent=1 // pred_check_branch
      %111 = sbr.rel (0) target = $region49
    $region48: #{tpu_custom_call.1} parent=1 // pred_region
      _
    $region49: #{tpu_custom_call.1} parent=1 // pred_fallthru
      _
    // Predicated region
    $region50: #{tpu_custom_call.1} parent=1 // pred_check
      _
    $region51: #{tpu_custom_call.1} parent=1 // pred_check_branch
      %113 = sbr.rel (0) target = $region53
    $region52: #{tpu_custom_call.1} parent=1 // pred_region
      %115 = dma.done [#allocation3], 256
    $region53: #{tpu_custom_call.1} parent=1 // pred_fallthru
      _
    // Predicated region
    $region54: #{tpu_custom_call.1} parent=1 // pred_check
      _
    $region55: #{tpu_custom_call.1} parent=1 // pred_check_branch
      %117 = sbr.rel (0) target = $region57
    $region56: #{tpu_custom_call.1} parent=1 // pred_region
      %119 = dma.done [#allocation6], 256
    $region57: #{tpu_custom_call.1} parent=1 // pred_fallthru
      _
    // Predicated region
    $region58: #{tpu_custom_call.1} parent=1 // pred_check
      _
    $region59: #{tpu_custom_call.1} parent=1 // pred_check_branch
      %121 = sbr.rel (0) target = $region61
    $region60: #{tpu_custom_call.1} parent=1 // pred_region
      %123 = dma.done [#allocation6], 512
    $region61: #{tpu_custom_call.1} parent=1 // pred_fallthru
      _
    // Predicated region
    $region62: #{tpu_custom_call.1} parent=1 // pred_check
      _
    $region63: #{tpu_custom_call.1} parent=1 // pred_check_branch
      %125 = sbr.rel (0) target = $region65
    $region64: #{tpu_custom_call.1} parent=1 // pred_region
      %127 = dma.done [#allocation9], 512
    $region65: #{tpu_custom_call.1} parent=1 // pred_fallthru
      _
    // Predicated region
    $region66: #{tpu_custom_call.1} parent=1 // pred_check
      _
    $region67: #{tpu_custom_call.1} parent=1 // pred_check_branch
      %129 = sbr.rel (0) target = $region69
    $region68: #{tpu_custom_call.1} parent=1 // pred_region
      %131 = dma.done [#allocation9], 512
    $region69: #{tpu_custom_call.1} parent=1 // pred_fallthru
      _
    // Predicated region
    $region70: #{tpu_custom_call.1} parent=1 // pred_check
      _
    $region71: #{tpu_custom_call.1} parent=1 // pred_check_branch
      %133 = sbr.rel (0) target = $region73
    $region72: #{tpu_custom_call.1} parent=1 // pred_region
      %135 = dma.done [#allocation12], 512
    $region73: #{tpu_custom_call.1} parent=1 // pred_fallthru
      _
    %v136 = vld [vmem:[#allocation2] sm:$0xff]
    %v137 = vld [vmem:[#allocation2 + $0x8] sm:$0xff]
    %v138 = vld [vmem:[#allocation5] sm:$0xff]
    %v139 = vld [vmem:[#allocation5 + $0x8] sm:$0xff]
    %v140 = vld [vmem:[#allocation7] sm:$0xff]
    %v141 = vld [vmem:[#allocation7 + $0x8] sm:$0xff]
    %v142 = vld [vmem:[#allocation7 + $0x10] sm:$0xff]
    %v143 = vld [vmem:[#allocation7 + $0x18] sm:$0xff]
    %vm144 = vcmask 261120
    %v146 = vsel %vm144, %v136, 0
    %v149 = vsel %vm144, %v137, 0
    %151 = vmatpush.msra.mxu0 0.0
    %152 = vmatpush.msra.mxu0 0.0
    %153 = vmatpush.msra.mxu0 0.0
    %154 = vmatpush.msra.mxu0 0.0
    %155 = vmatpush.msra.mxu0 0.0
    %156 = vmatpush.msra.mxu0 0.0
    %157 = vmatpush.msra.mxu0 0.0
    %158 = vmatpush.msra.mxu0 0.0
    %159 = vmatpush.msra.mxu0 0.0
    %160 = vmatpush.msra.mxu0 0.0
    %161 = vmatpush.msra.mxu0 0.0
    %162 = vmatpush.msra.mxu0 0.0
    %163 = vmatpush.msra.mxu0 %v143
    %164 = vmatpush.msra.mxu0 %v142
    %165 = vmatpush.msra.mxu0 %v141
    %166 = vmatpush.msra.mxu0 %v140
    %167 = vmatmul.f32.gmra.mxu0 %v146
    %v168 = vpop.f32.mrf.mxu0
    %v169 = vadd.f32 0.0, %v168
    %170 = vmatmul.f32.gmra.mxu0 %v149
    %v171 = vpop.f32.mrf.mxu0
    %v172 = vadd.f32 0.0, %v171
    %173 = vdwg.mxu0
    %v174 = vld [vmem:[#allocation8] sm:$0xff]
    %v175 = vld [vmem:[#allocation8 + $0x8] sm:$0xff]
    %v176 = vld [vmem:[#allocation8 + $0x10] sm:$0xff]
    %v177 = vld [vmem:[#allocation8 + $0x18] sm:$0xff]
    %180 = vrot.lane.b32.xlu0 %v169, 96
    %v181 = vpop.permute.xlu0 %180
    %182 = vrot.lane.b32.xlu0 %v172, 96
    %v183 = vpop.permute.xlu0 %182
    %vm184 = vcmask 31744
    %v185 = vsel %vm184, %v169, 0
    %v187 = vsel %vm184, %v172, 0
    %v189 = vsel %vm184, %v181, 0
    %v191 = vsel %vm184, %v183, 0
    %193 = vmatpush.xpose.msra.mxu0 0.0
    %194 = vmatpush.xpose.msra.mxu0 0.0
    %195 = vmatpush.xpose.msra.mxu0 0.0
    %196 = vmatpush.xpose.msra.mxu0 0.0
    %197 = vmatpush.xpose.msra.mxu0 0.0
    %198 = vmatpush.xpose.msra.mxu0 0.0
    %199 = vmatpush.xpose.msra.mxu0 0.0
    %200 = vmatpush.xpose.msra.mxu0 0.0
    %201 = vmatpush.xpose.msra.mxu0 0.0
    %202 = vmatpush.xpose.msra.mxu0 0.0
    %203 = vmatpush.xpose.msra.mxu0 0.0
    %204 = vmatpush.xpose.msra.mxu0 0.0
    %205 = vmatpush.xpose.msra.mxu0 0.0
    %206 = vmatpush.xpose.msra.mxu0 0.0
    %207 = vmatpush.xpose.msra.mxu0 %v191
    %208 = vmatpush.xpose.msra.mxu0 %v189
    %209 = vmatmul.f32.gmra.mxu0 %v185
    %v210 = vpop.f32.mrf.mxu0
    %v211 = vadd.f32 0.0, %v210
    %212 = vmatmul.f32.gmra.mxu0 %v187
    %v213 = vpop.f32.mrf.mxu0
    %v214 = vadd.f32 0.0, %v213
    %215 = vdwg.mxu0
    %v216 = vmul.f32 %v211, 0.5
    %v217 = vmul.f32 %v214, 0.5
    %v218 = vadd.f32 %v216, %v138
    %v219 = vadd.f32 %v217, %v139
    %vm220 = vcmask 130048
    %v221 = vsel %vm220, %v218, -inf
    %222 = vmax.xlane.f32.xlu0 %v221
    %v223 = vpop.xlane.xlu0 %222
    %v224 = vsel %vm220, %v219, -inf
    %225 = vmax.xlane.f32.xlu0 %v224
    %v226 = vpop.xlane.xlu0 %225
    %v227 = vsub.f32 %v218, %v223
    %v228 = vsub.f32 %v219, %v226
    %v229 = vmul.f32 %v227, 1.442695
    %v230 = vpow.pop %v229
    %v231 = vmul.f32 %v228, 1.442695
    %v232 = vpow.pop %v231
    %v233 = vsel %vm220, %v230, 0.0
    %234 = vadd.xlane.f32.xlu0 %v233
    %v235 = vpop.xlane.xlu0 %234
    %v236 = vsel %vm220, %v232, 0.0
    %237 = vadd.xlane.f32.xlu0 %v236
    %v238 = vpop.xlane.xlu0 %237
    %v239 = vrcp.pop %v235
    %v240 = vrcp.pop %v238
    %v241 = vmul.f32 %v230, %v239
    %v242 = vmul.f32 %v232, %v240
    %243 = vrot.lane.b32.xlu0 %v169, 64
    %v244 = vpop.permute.xlu0 %243
    %245 = vrot.lane.b32.xlu0 %v172, 64
    %v246 = vpop.permute.xlu0 %245
    %v250 = vsel %vm220, %v241, 0
    %v253 = vsel %vm220, %v242, 0
    %255 = vmatpush.msra.mxu0 0.0
    %256 = vmatpush.msra.mxu0 0.0
    %257 = vmatpush.msra.mxu0 0.0
    %258 = vmatpush.msra.mxu0 0.0
    %259 = vmatpush.msra.mxu0 0.0
    %260 = vmatpush.msra.mxu0 0.0
    %261 = vmatpush.msra.mxu0 0.0
    %262 = vmatpush.msra.mxu0 0.0
    %263 = vmatpush.msra.mxu0 0.0
    %264 = vmatpush.msra.mxu0 0.0
    %265 = vmatpush.msra.mxu0 0.0
    %266 = vmatpush.msra.mxu0 0.0
    %267 = vmatpush.msra.mxu0 0.0
    %268 = vmatpush.msra.mxu0 0.0
    %269 = vmatpush.msra.mxu0 %v246
    %270 = vmatpush.msra.mxu0 %v244
    %271 = vmatmul.f32.gmra.mxu0 %v250
    %v272 = vpop.f32.mrf.mxu0
    %v273 = vadd.f32 0.0, %v272
    %274 = vmatmul.f32.gmra.mxu0 %v253
    %v275 = vpop.f32.mrf.mxu0
    %v276 = vadd.f32 0.0, %v275
    %277 = vdwg.mxu0
    %278 = vrot.lane.b32.xlu0 %v169, 124
    %v279 = vpop.permute.xlu0 %278
    %280 = vrot.lane.b32.xlu0 %v172, 124
    %v281 = vpop.permute.xlu0 %280
    %282 = vrot.lane.b32.xlu0 %v169, 92
    %v283 = vpop.permute.xlu0 %282
    %284 = vrot.lane.b32.xlu0 %v172, 92
    %v285 = vpop.permute.xlu0 %284
    %v286 = vsel %vm184, %v279, 0
    %v288 = vsel %vm184, %v281, 0
    %v290 = vsel %vm184, %v283, 0
    %v292 = vsel %vm184, %v285, 0
    %294 = vmatpush.xpose.msra.mxu0 0.0
    %295 = vmatpush.xpose.msra.mxu0 0.0
    %296 = vmatpush.xpose.msra.mxu0 0.0
    %297 = vmatpush.xpose.msra.mxu0 0.0
    %298 = vmatpush.xpose.msra.mxu0 0.0
    %299 = vmatpush.xpose.msra.mxu0 0.0
    %300 = vmatpush.xpose.msra.mxu0 0.0
    %301 = vmatpush.xpose.msra.mxu0 0.0
    %302 = vmatpush.xpose.msra.mxu0 0.0
    %303 = vmatpush.xpose.msra.mxu0 0.0
    %304 = vmatpush.xpose.msra.mxu0 0.0
    %305 = vmatpush.xpose.msra.mxu0 0.0
    %306 = vmatpush.xpose.msra.mxu0 0.0
    %307 = vmatpush.xpose.msra.mxu0 0.0
    %308 = vmatpush.xpose.msra.mxu0 %v292
    %309 = vmatpush.xpose.msra.mxu0 %v290
    %310 = vmatmul.f32.gmra.mxu0 %v286
    %v311 = vpop.f32.mrf.mxu0
    %v312 = vadd.f32 0.0, %v311
    %313 = vmatmul.f32.gmra.mxu0 %v288
    %v314 = vpop.f32.mrf.mxu0
    %v315 = vadd.f32 0.0, %v314
    %316 = vdwg.mxu0
    %v317 = vmul.f32 %v312, 0.5
    %v318 = vmul.f32 %v315, 0.5
    %v319 = vadd.f32 %v317, %v138
    %v320 = vadd.f32 %v318, %v139
    %v321 = vsel %vm220, %v319, -inf
    %322 = vmax.xlane.f32.xlu0 %v321
    %v323 = vpop.xlane.xlu0 %322
    %v324 = vsel %vm220, %v320, -inf
    %325 = vmax.xlane.f32.xlu0 %v324
    %v326 = vpop.xlane.xlu0 %325
    %v327 = vsub.f32 %v319, %v323
    %v328 = vsub.f32 %v320, %v326
    %v329 = vmul.f32 %v327, 1.442695
    %v330 = vpow.pop %v329
    %v331 = vmul.f32 %v328, 1.442695
    %v332 = vpow.pop %v331
    %v333 = vsel %vm220, %v330, 0.0
    %334 = vadd.xlane.f32.xlu0 %v333
    %v335 = vpop.xlane.xlu0 %334
    %v336 = vsel %vm220, %v332, 0.0
    %337 = vadd.xlane.f32.xlu0 %v336
    %v338 = vpop.xlane.xlu0 %337
    %v339 = vrcp.pop %v335
    %v340 = vrcp.pop %v338
    %v341 = vmul.f32 %v330, %v339
    %v342 = vmul.f32 %v332, %v340
    %343 = vrot.lane.b32.xlu0 %v169, 60
    %v344 = vpop.permute.xlu0 %343
    %345 = vrot.lane.b32.xlu0 %v172, 60
    %v346 = vpop.permute.xlu0 %345
    %v350 = vsel %vm220, %v341, 0
    %v353 = vsel %vm220, %v342, 0
    %355 = vmatpush.msra.mxu0 0.0
    %356 = vmatpush.msra.mxu0 0.0
    %357 = vmatpush.msra.mxu0 0.0
    %358 = vmatpush.msra.mxu0 0.0
    %359 = vmatpush.msra.mxu0 0.0
    %360 = vmatpush.msra.mxu0 0.0
    %361 = vmatpush.msra.mxu0 0.0
    %362 = vmatpush.msra.mxu0 0.0
    %363 = vmatpush.msra.mxu0 0.0
    %364 = vmatpush.msra.mxu0 0.0
    %365 = vmatpush.msra.mxu0 0.0
    %366 = vmatpush.msra.mxu0 0.0
    %367 = vmatpush.msra.mxu0 0.0
    %368 = vmatpush.msra.mxu0 0.0
    %369 = vmatpush.msra.mxu0 %v346
    %370 = vmatpush.msra.mxu0 %v344
    %371 = vmatmul.f32.gmra.mxu0 %v350
    %v372 = vpop.f32.mrf.mxu0
    %v373 = vadd.f32 0.0, %v372
    %374 = vmatmul.f32.gmra.mxu0 %v353
    %v375 = vpop.f32.mrf.mxu0
    %v376 = vadd.f32 0.0, %v375
    %377 = vdwg.mxu0
    %v379 = vrot.slane %v174, 4
    %v381 = vsel %vm184, %v373, 0
    %v384 = vsel %vm184, %v376, 0
    %vm386 = vcmask 1043456
    %v387 = vsel %vm386, %v379, 0
    %389 = vmatpush.msra.mxu0 0.0
    %390 = vmatpush.msra.mxu0 0.0
    %391 = vmatpush.msra.mxu0 0.0
    %392 = vmatpush.msra.mxu0 0.0
    %393 = vmatpush.msra.mxu0 0.0
    %394 = vmatpush.msra.mxu0 0.0
    %395 = vmatpush.msra.mxu0 0.0
    %396 = vmatpush.msra.mxu0 0.0
    %397 = vmatpush.msra.mxu0 0.0
    %398 = vmatpush.msra.mxu0 0.0
    %399 = vmatpush.msra.mxu0 0.0
    %400 = vmatpush.msra.mxu0 0.0
    %401 = vmatpush.msra.mxu0 0.0
    %402 = vmatpush.msra.mxu0 0.0
    %403 = vmatpush.msra.mxu0 0.0
    %404 = vmatpush.msra.mxu0 %v387
    %405 = vmatmul.f32.gmra.mxu0 %v381
    %v406 = vpop.f32.mrf.mxu0
    %v407 = vadd.f32 0.0, %v406
    %408 = vmatmul.f32.gmra.mxu0 %v384
    %v409 = vpop.f32.mrf.mxu0
    %v410 = vadd.f32 0.0, %v409
    %411 = vdwg.mxu0
    %v413 = vsel %vm184, %v273, 0
    %v416 = vsel %vm184, %v276, 0
    %v418 = vsel %vm386, %v174, 0
    %420 = vmatpush.msra.mxu0 0.0
    %421 = vmatpush.msra.mxu0 0.0
    %422 = vmatpush.msra.mxu0 0.0
    %423 = vmatpush.msra.mxu0 0.0
    %424 = vmatpush.msra.mxu0 0.0
    %425 = vmatpush.msra.mxu0 0.0
    %426 = vmatpush.msra.mxu0 0.0
    %427 = vmatpush.msra.mxu0 0.0
    %428 = vmatpush.msra.mxu0 0.0
    %429 = vmatpush.msra.mxu0 0.0
    %430 = vmatpush.msra.mxu0 0.0
    %431 = vmatpush.msra.mxu0 0.0
    %432 = vmatpush.msra.mxu0 0.0
    %433 = vmatpush.msra.mxu0 0.0
    %434 = vmatpush.msra.mxu0 0.0
    %435 = vmatpush.msra.mxu0 %v418
    %436 = vmatmul.f32.gmra.mxu0 %v413
    %v437 = vpop.f32.mrf.mxu0
    %v438 = vadd.f32 %v407, %v437
    %439 = vmatmul.f32.gmra.mxu0 %v416
    %v440 = vpop.f32.mrf.mxu0
    %v441 = vadd.f32 %v410, %v440
    %442 = vdwg.mxu0
    %443 = vrot.lane.b32.xlu0 %v169, 120
    %v444 = vpop.permute.xlu0 %443
    %445 = vrot.lane.b32.xlu0 %v172, 120
    %v446 = vpop.permute.xlu0 %445
    %447 = vrot.lane.b32.xlu0 %v169, 88
    %v448 = vpop.permute.xlu0 %447
    %449 = vrot.lane.b32.xlu0 %v172, 88
    %v450 = vpop.permute.xlu0 %449
    %v451 = vsel %vm184, %v444, 0
    %v453 = vsel %vm184, %v446, 0
    %v455 = vsel %vm184, %v448, 0
    %v457 = vsel %vm184, %v450, 0
    %459 = vmatpush.xpose.msra.mxu0 0.0
    %460 = vmatpush.xpose.msra.mxu0 0.0
    %461 = vmatpush.xpose.msra.mxu0 0.0
    %462 = vmatpush.xpose.msra.mxu0 0.0
    %463 = vmatpush.xpose.msra.mxu0 0.0
    %464 = vmatpush.xpose.msra.mxu0 0.0
    %465 = vmatpush.xpose.msra.mxu0 0.0
    %466 = vmatpush.xpose.msra.mxu0 0.0
    %467 = vmatpush.xpose.msra.mxu0 0.0
    %468 = vmatpush.xpose.msra.mxu0 0.0
    %469 = vmatpush.xpose.msra.mxu0 0.0
    %470 = vmatpush.xpose.msra.mxu0 0.0
    %471 = vmatpush.xpose.msra.mxu0 0.0
    %472 = vmatpush.xpose.msra.mxu0 0.0
    %473 = vmatpush.xpose.msra.mxu0 %v457
    %474 = vmatpush.xpose.msra.mxu0 %v455
    %475 = vmatmul.f32.gmra.mxu0 %v451
    %v476 = vpop.f32.mrf.mxu0
    %v477 = vadd.f32 0.0, %v476
    %478 = vmatmul.f32.gmra.mxu0 %v453
    %v479 = vpop.f32.mrf.mxu0
    %v480 = vadd.f32 0.0, %v479
    %481 = vdwg.mxu0
    %v482 = vmul.f32 %v477, 0.5
    %v483 = vmul.f32 %v480, 0.5
    %v484 = vadd.f32 %v482, %v138
    %v485 = vadd.f32 %v483, %v139
    %v486 = vsel %vm220, %v484, -inf
    %487 = vmax.xlane.f32.xlu0 %v486
    %v488 = vpop.xlane.xlu0 %487
    %v489 = vsel %vm220, %v485, -inf
    %490 = vmax.xlane.f32.xlu0 %v489
    %v491 = vpop.xlane.xlu0 %490
    %v492 = vsub.f32 %v484, %v488
    %v493 = vsub.f32 %v485, %v491
    %v494 = vmul.f32 %v492, 1.442695
    %v495 = vpow.pop %v494
    %v496 = vmul.f32 %v493, 1.442695
    %v497 = vpow.pop %v496
    %v498 = vsel %vm220, %v495, 0.0
    %499 = vadd.xlane.f32.xlu0 %v498
    %v500 = vpop.xlane.xlu0 %499
    %v501 = vsel %vm220, %v497, 0.0
    %502 = vadd.xlane.f32.xlu0 %v501
    %v503 = vpop.xlane.xlu0 %502
    %v504 = vrcp.pop %v500
    %v505 = vrcp.pop %v503
    %v506 = vmul.f32 %v495, %v504
    %v507 = vmul.f32 %v497, %v505
    %508 = vrot.lane.b32.xlu0 %v169, 56
    %v509 = vpop.permute.xlu0 %508
    %510 = vrot.lane.b32.xlu0 %v172, 56
    %v511 = vpop.permute.xlu0 %510
    %v515 = vsel %vm220, %v506, 0
    %v518 = vsel %vm220, %v507, 0
    %520 = vmatpush.msra.mxu0 0.0
    %521 = vmatpush.msra.mxu0 0.0
    %522 = vmatpush.msra.mxu0 0.0
    %523 = vmatpush.msra.mxu0 0.0
    %524 = vmatpush.msra.mxu0 0.0
    %525 = vmatpush.msra.mxu0 0.0
    %526 = vmatpush.msra.mxu0 0.0
    %527 = vmatpush.msra.mxu0 0.0
    %528 = vmatpush.msra.mxu0 0.0
    %529 = vmatpush.msra.mxu0 0.0
    %530 = vmatpush.msra.mxu0 0.0
    %531 = vmatpush.msra.mxu0 0.0
    %532 = vmatpush.msra.mxu0 0.0
    %533 = vmatpush.msra.mxu0 0.0
    %534 = vmatpush.msra.mxu0 %v511
    %535 = vmatpush.msra.mxu0 %v509
    %536 = vmatmul.f32.gmra.mxu0 %v515
    %v537 = vpop.f32.mrf.mxu0
    %v538 = vadd.f32 0.0, %v537
    %539 = vmatmul.f32.gmra.mxu0 %v518
    %v540 = vpop.f32.mrf.mxu0
    %v541 = vadd.f32 0.0, %v540
    %542 = vdwg.mxu0
    %v544 = vsel %vm184, %v538, 0
    %v547 = vsel %vm184, %v541, 0
    %v550 = vsel %vm386, %v175, 0
    %552 = vmatpush.msra.mxu0 0.0
    %553 = vmatpush.msra.mxu0 0.0
    %554 = vmatpush.msra.mxu0 0.0
    %555 = vmatpush.msra.mxu0 0.0
    %556 = vmatpush.msra.mxu0 0.0
    %557 = vmatpush.msra.mxu0 0.0
    %558 = vmatpush.msra.mxu0 0.0
    %559 = vmatpush.msra.mxu0 0.0
    %560 = vmatpush.msra.mxu0 0.0
    %561 = vmatpush.msra.mxu0 0.0
    %562 = vmatpush.msra.mxu0 0.0
    %563 = vmatpush.msra.mxu0 0.0
    %564 = vmatpush.msra.mxu0 0.0
    %565 = vmatpush.msra.mxu0 0.0
    %566 = vmatpush.msra.mxu0 0.0
    %567 = vmatpush.msra.mxu0 %v550
    %568 = vmatmul.f32.gmra.mxu0 %v544
    %v569 = vpop.f32.mrf.mxu0
    %v570 = vadd.f32 0.0, %v569
    %571 = vmatmul.f32.gmra.mxu0 %v547
    %v572 = vpop.f32.mrf.mxu0
    %v573 = vadd.f32 0.0, %v572
    %574 = vdwg.mxu0
    %v575 = vadd.f32 %v438, %v570
    %v576 = vadd.f32 %v441, %v573
    %577 = vrot.lane.b32.xlu0 %v169, 116
    %v578 = vpop.permute.xlu0 %577
    %579 = vrot.lane.b32.xlu0 %v172, 116
    %v580 = vpop.permute.xlu0 %579
    %581 = vrot.lane.b32.xlu0 %v169, 84
    %v582 = vpop.permute.xlu0 %581
    %583 = vrot.lane.b32.xlu0 %v172, 84
    %v584 = vpop.permute.xlu0 %583
    %v585 = vsel %vm184, %v578, 0
    %v587 = vsel %vm184, %v580, 0
    %v589 = vsel %vm184, %v582, 0
    %v591 = vsel %vm184, %v584, 0
    %593 = vmatpush.xpose.msra.mxu0 0.0
    %594 = vmatpush.xpose.msra.mxu0 0.0
    %595 = vmatpush.xpose.msra.mxu0 0.0
    %596 = vmatpush.xpose.msra.mxu0 0.0
    %597 = vmatpush.xpose.msra.mxu0 0.0
    %598 = vmatpush.xpose.msra.mxu0 0.0
    %599 = vmatpush.xpose.msra.mxu0 0.0
    %600 = vmatpush.xpose.msra.mxu0 0.0
    %601 = vmatpush.xpose.msra.mxu0 0.0
    %602 = vmatpush.xpose.msra.mxu0 0.0
    %603 = vmatpush.xpose.msra.mxu0 0.0
    %604 = vmatpush.xpose.msra.mxu0 0.0
    %605 = vmatpush.xpose.msra.mxu0 0.0
    %606 = vmatpush.xpose.msra.mxu0 0.0
    %607 = vmatpush.xpose.msra.mxu0 %v591
    %608 = vmatpush.xpose.msra.mxu0 %v589
    %609 = vmatmul.f32.gmra.mxu0 %v585
    %v610 = vpop.f32.mrf.mxu0
    %v611 = vadd.f32 0.0, %v610
    %612 = vmatmul.f32.gmra.mxu0 %v587
    %v613 = vpop.f32.mrf.mxu0
    %v614 = vadd.f32 0.0, %v613
    %615 = vdwg.mxu0
    %v616 = vmul.f32 %v611, 0.5
    %v617 = vmul.f32 %v614, 0.5
    %v618 = vadd.f32 %v616, %v138
    %v619 = vadd.f32 %v617, %v139
    %v620 = vsel %vm220, %v618, -inf
    %621 = vmax.xlane.f32.xlu0 %v620
    %v622 = vpop.xlane.xlu0 %621
    %v623 = vsel %vm220, %v619, -inf
    %624 = vmax.xlane.f32.xlu0 %v623
    %v625 = vpop.xlane.xlu0 %624
    %v626 = vsub.f32 %v618, %v622
    %v627 = vsub.f32 %v619, %v625
    %v628 = vmul.f32 %v626, 1.442695
    %v629 = vpow.pop %v628
    %v630 = vmul.f32 %v627, 1.442695
    %v631 = vpow.pop %v630
    %v632 = vsel %vm220, %v629, 0.0
    %633 = vadd.xlane.f32.xlu0 %v632
    %v634 = vpop.xlane.xlu0 %633
    %v635 = vsel %vm220, %v631, 0.0
    %636 = vadd.xlane.f32.xlu0 %v635
    %v637 = vpop.xlane.xlu0 %636
    %v638 = vrcp.pop %v634
    %v639 = vrcp.pop %v637
    %v640 = vmul.f32 %v629, %v638
    %v641 = vmul.f32 %v631, %v639
    %642 = vrot.lane.b32.xlu0 %v169, 52
    %v643 = vpop.permute.xlu0 %642
    %644 = vrot.lane.b32.xlu0 %v172, 52
    %v645 = vpop.permute.xlu0 %644
    %v649 = vsel %vm220, %v640, 0
    %v652 = vsel %vm220, %v641, 0
    %654 = vmatpush.msra.mxu0 0.0
    %655 = vmatpush.msra.mxu0 0.0
    %656 = vmatpush.msra.mxu0 0.0
    %657 = vmatpush.msra.mxu0 0.0
    %658 = vmatpush.msra.mxu0 0.0
    %659 = vmatpush.msra.mxu0 0.0
    %660 = vmatpush.msra.mxu0 0.0
    %661 = vmatpush.msra.mxu0 0.0
    %662 = vmatpush.msra.mxu0 0.0
    %663 = vmatpush.msra.mxu0 0.0
    %664 = vmatpush.msra.mxu0 0.0
    %665 = vmatpush.msra.mxu0 0.0
    %666 = vmatpush.msra.mxu0 0.0
    %667 = vmatpush.msra.mxu0 0.0
    %668 = vmatpush.msra.mxu0 %v645
    %669 = vmatpush.msra.mxu0 %v643
    %670 = vmatmul.f32.gmra.mxu0 %v649
    %v671 = vpop.f32.mrf.mxu0
    %v672 = vadd.f32 0.0, %v671
    %673 = vmatmul.f32.gmra.mxu0 %v652
    %v674 = vpop.f32.mrf.mxu0
    %v675 = vadd.f32 0.0, %v674
    %676 = vdwg.mxu0
    %v677 = vrot.slane %v175, 4
    %v679 = vsel %vm184, %v672, 0
    %v682 = vsel %vm184, %v675, 0
    %v684 = vsel %vm386, %v677, 0
    %686 = vmatpush.msra.mxu0 0.0
    %687 = vmatpush.msra.mxu0 0.0
    %688 = vmatpush.msra.mxu0 0.0
    %689 = vmatpush.msra.mxu0 0.0
    %690 = vmatpush.msra.mxu0 0.0
    %691 = vmatpush.msra.mxu0 0.0
    %692 = vmatpush.msra.mxu0 0.0
    %693 = vmatpush.msra.mxu0 0.0
    %694 = vmatpush.msra.mxu0 0.0
    %695 = vmatpush.msra.mxu0 0.0
    %696 = vmatpush.msra.mxu0 0.0
    %697 = vmatpush.msra.mxu0 0.0
    %698 = vmatpush.msra.mxu0 0.0
    %699 = vmatpush.msra.mxu0 0.0
    %700 = vmatpush.msra.mxu0 0.0
    %701 = vmatpush.msra.mxu0 %v684
    %702 = vmatmul.f32.gmra.mxu0 %v679
    %v703 = vpop.f32.mrf.mxu0
    %v704 = vadd.f32 0.0, %v703
    %705 = vmatmul.f32.gmra.mxu0 %v682
    %v706 = vpop.f32.mrf.mxu0
    %v707 = vadd.f32 0.0, %v706
    %708 = vdwg.mxu0
    %v709 = vadd.f32 %v575, %v704
    %v710 = vadd.f32 %v576, %v707
    %711 = vrot.lane.b32.xlu0 %v169, 112
    %v712 = vpop.permute.xlu0 %711
    %713 = vrot.lane.b32.xlu0 %v172, 112
    %v714 = vpop.permute.xlu0 %713
    %715 = vrot.lane.b32.xlu0 %v169, 80
    %v716 = vpop.permute.xlu0 %715
    %717 = vrot.lane.b32.xlu0 %v172, 80
    %v718 = vpop.permute.xlu0 %717
    %v719 = vsel %vm184, %v712, 0
    %v721 = vsel %vm184, %v714, 0
    %v723 = vsel %vm184, %v716, 0
    %v725 = vsel %vm184, %v718, 0
    %727 = vmatpush.xpose.msra.mxu0 0.0
    %728 = vmatpush.xpose.msra.mxu0 0.0
    %729 = vmatpush.xpose.msra.mxu0 0.0
    %730 = vmatpush.xpose.msra.mxu0 0.0
    %731 = vmatpush.xpose.msra.mxu0 0.0
    %732 = vmatpush.xpose.msra.mxu0 0.0
    %733 = vmatpush.xpose.msra.mxu0 0.0
    %734 = vmatpush.xpose.msra.mxu0 0.0
    %735 = vmatpush.xpose.msra.mxu0 0.0
    %736 = vmatpush.xpose.msra.mxu0 0.0
    %737 = vmatpush.xpose.msra.mxu0 0.0
    %738 = vmatpush.xpose.msra.mxu0 0.0
    %739 = vmatpush.xpose.msra.mxu0 0.0
    %740 = vmatpush.xpose.msra.mxu0 0.0
    %741 = vmatpush.xpose.msra.mxu0 %v725
    %742 = vmatpush.xpose.msra.mxu0 %v723
    %743 = vmatmul.f32.gmra.mxu0 %v719
    %v744 = vpop.f32.mrf.mxu0
    %v745 = vadd.f32 0.0, %v744
    %746 = vmatmul.f32.gmra.mxu0 %v721
    %v747 = vpop.f32.mrf.mxu0
    %v748 = vadd.f32 0.0, %v747
    %749 = vdwg.mxu0
    %v750 = vmul.f32 %v745, 0.5
    %v751 = vmul.f32 %v748, 0.5
    %v752 = vadd.f32 %v750, %v138
    %v753 = vadd.f32 %v751, %v139
    %v754 = vsel %vm220, %v752, -inf
    %755 = vmax.xlane.f32.xlu0 %v754
    %v756 = vpop.xlane.xlu0 %755
    %v757 = vsel %vm220, %v753, -inf
    %758 = vmax.xlane.f32.xlu0 %v757
    %v759 = vpop.xlane.xlu0 %758
    %v760 = vsub.f32 %v752, %v756
    %v761 = vsub.f32 %v753, %v759
    %v762 = vmul.f32 %v760, 1.442695
    %v763 = vpow.pop %v762
    %v764 = vmul.f32 %v761, 1.442695
    %v765 = vpow.pop %v764
    %v766 = vsel %vm220, %v763, 0.0
    %767 = vadd.xlane.f32.xlu0 %v766
    %v768 = vpop.xlane.xlu0 %767
    %v769 = vsel %vm220, %v765, 0.0
    %770 = vadd.xlane.f32.xlu0 %v769
    %v771 = vpop.xlane.xlu0 %770
    %v772 = vrcp.pop %v768
    %v773 = vrcp.pop %v771
    %v774 = vmul.f32 %v763, %v772
    %v775 = vmul.f32 %v765, %v773
    %776 = vrot.lane.b32.xlu0 %v169, 48
    %v777 = vpop.permute.xlu0 %776
    %778 = vrot.lane.b32.xlu0 %v172, 48
    %v779 = vpop.permute.xlu0 %778
    %v783 = vsel %vm220, %v774, 0
    %v786 = vsel %vm220, %v775, 0
    %788 = vmatpush.msra.mxu0 0.0
    %789 = vmatpush.msra.mxu0 0.0
    %790 = vmatpush.msra.mxu0 0.0
    %791 = vmatpush.msra.mxu0 0.0
    %792 = vmatpush.msra.mxu0 0.0
    %793 = vmatpush.msra.mxu0 0.0
    %794 = vmatpush.msra.mxu0 0.0
    %795 = vmatpush.msra.mxu0 0.0
    %796 = vmatpush.msra.mxu0 0.0
    %797 = vmatpush.msra.mxu0 0.0
    %798 = vmatpush.msra.mxu0 0.0
    %799 = vmatpush.msra.mxu0 0.0
    %800 = vmatpush.msra.mxu0 0.0
    %801 = vmatpush.msra.mxu0 0.0
    %802 = vmatpush.msra.mxu0 %v779
    %803 = vmatpush.msra.mxu0 %v777
    %804 = vmatmul.f32.gmra.mxu0 %v783
    %v805 = vpop.f32.mrf.mxu0
    %v806 = vadd.f32 0.0, %v805
    %807 = vmatmul.f32.gmra.mxu0 %v786
    %v808 = vpop.f32.mrf.mxu0
    %v809 = vadd.f32 0.0, %v808
    %810 = vdwg.mxu0
    %v812 = vsel %vm184, %v806, 0
    %v815 = vsel %vm184, %v809, 0
    %v818 = vsel %vm386, %v176, 0
    %820 = vmatpush.msra.mxu0 0.0
    %821 = vmatpush.msra.mxu0 0.0
    %822 = vmatpush.msra.mxu0 0.0
    %823 = vmatpush.msra.mxu0 0.0
    %824 = vmatpush.msra.mxu0 0.0
    %825 = vmatpush.msra.mxu0 0.0
    %826 = vmatpush.msra.mxu0 0.0
    %827 = vmatpush.msra.mxu0 0.0
    %828 = vmatpush.msra.mxu0 0.0
    %829 = vmatpush.msra.mxu0 0.0
    %830 = vmatpush.msra.mxu0 0.0
    %831 = vmatpush.msra.mxu0 0.0
    %832 = vmatpush.msra.mxu0 0.0
    %833 = vmatpush.msra.mxu0 0.0
    %834 = vmatpush.msra.mxu0 0.0
    %835 = vmatpush.msra.mxu0 %v818
    %836 = vmatmul.f32.gmra.mxu0 %v812
    %v837 = vpop.f32.mrf.mxu0
    %v838 = vadd.f32 0.0, %v837
    %839 = vmatmul.f32.gmra.mxu0 %v815
    %v840 = vpop.f32.mrf.mxu0
    %v841 = vadd.f32 0.0, %v840
    %842 = vdwg.mxu0
    %v843 = vadd.f32 %v709, %v838
    %v844 = vadd.f32 %v710, %v841
    %845 = vrot.lane.b32.xlu0 %v169, 108
    %v846 = vpop.permute.xlu0 %845
    %847 = vrot.lane.b32.xlu0 %v172, 108
    %v848 = vpop.permute.xlu0 %847
    %849 = vrot.lane.b32.xlu0 %v169, 76
    %v850 = vpop.permute.xlu0 %849
    %851 = vrot.lane.b32.xlu0 %v172, 76
    %v852 = vpop.permute.xlu0 %851
    %v853 = vsel %vm184, %v846, 0
    %v855 = vsel %vm184, %v848, 0
    %v857 = vsel %vm184, %v850, 0
    %v859 = vsel %vm184, %v852, 0
    %861 = vmatpush.xpose.msra.mxu0 0.0
    %862 = vmatpush.xpose.msra.mxu0 0.0
    %863 = vmatpush.xpose.msra.mxu0 0.0
    %864 = vmatpush.xpose.msra.mxu0 0.0
    %865 = vmatpush.xpose.msra.mxu0 0.0
    %866 = vmatpush.xpose.msra.mxu0 0.0
    %867 = vmatpush.xpose.msra.mxu0 0.0
    %868 = vmatpush.xpose.msra.mxu0 0.0
    %869 = vmatpush.xpose.msra.mxu0 0.0
    %870 = vmatpush.xpose.msra.mxu0 0.0
    %871 = vmatpush.xpose.msra.mxu0 0.0
    %872 = vmatpush.xpose.msra.mxu0 0.0
    %873 = vmatpush.xpose.msra.mxu0 0.0
    %874 = vmatpush.xpose.msra.mxu0 0.0
    %875 = vmatpush.xpose.msra.mxu0 %v859
    %876 = vmatpush.xpose.msra.mxu0 %v857
    %877 = vmatmul.f32.gmra.mxu0 %v853
    %v878 = vpop.f32.mrf.mxu0
    %v879 = vadd.f32 0.0, %v878
    %880 = vmatmul.f32.gmra.mxu0 %v855
    %v881 = vpop.f32.mrf.mxu0
    %v882 = vadd.f32 0.0, %v881
    %883 = vdwg.mxu0
    %v884 = vmul.f32 %v879, 0.5
    %v885 = vmul.f32 %v882, 0.5
    %v886 = vadd.f32 %v884, %v138
    %v887 = vadd.f32 %v885, %v139
    %v888 = vsel %vm220, %v886, -inf
    %889 = vmax.xlane.f32.xlu0 %v888
    %v890 = vpop.xlane.xlu0 %889
    %v891 = vsel %vm220, %v887, -inf
    %892 = vmax.xlane.f32.xlu0 %v891
    %v893 = vpop.xlane.xlu0 %892
    %v894 = vsub.f32 %v886, %v890
    %v895 = vsub.f32 %v887, %v893
    %v896 = vmul.f32 %v894, 1.442695
    %v897 = vpow.pop %v896
    %v898 = vmul.f32 %v895, 1.442695
    %v899 = vpow.pop %v898
    %v900 = vsel %vm220, %v897, 0.0
    %901 = vadd.xlane.f32.xlu0 %v900
    %v902 = vpop.xlane.xlu0 %901
    %v903 = vsel %vm220, %v899, 0.0
    %904 = vadd.xlane.f32.xlu0 %v903
    %v905 = vpop.xlane.xlu0 %904
    %v906 = vrcp.pop %v902
    %v907 = vrcp.pop %v905
    %v908 = vmul.f32 %v897, %v906
    %v909 = vmul.f32 %v899, %v907
    %910 = vrot.lane.b32.xlu0 %v169, 44
    %v911 = vpop.permute.xlu0 %910
    %912 = vrot.lane.b32.xlu0 %v172, 44
    %v913 = vpop.permute.xlu0 %912
    %v917 = vsel %vm220, %v908, 0
    %v920 = vsel %vm220, %v909, 0
    %922 = vmatpush.msra.mxu0 0.0
    %923 = vmatpush.msra.mxu0 0.0
    %924 = vmatpush.msra.mxu0 0.0
    %925 = vmatpush.msra.mxu0 0.0
    %926 = vmatpush.msra.mxu0 0.0
    %927 = vmatpush.msra.mxu0 0.0
    %928 = vmatpush.msra.mxu0 0.0
    %929 = vmatpush.msra.mxu0 0.0
    %930 = vmatpush.msra.mxu0 0.0
    %931 = vmatpush.msra.mxu0 0.0
    %932 = vmatpush.msra.mxu0 0.0
    %933 = vmatpush.msra.mxu0 0.0
    %934 = vmatpush.msra.mxu0 0.0
    %935 = vmatpush.msra.mxu0 0.0
    %936 = vmatpush.msra.mxu0 %v913
    %937 = vmatpush.msra.mxu0 %v911
    %938 = vmatmul.f32.gmra.mxu0 %v917
    %v939 = vpop.f32.mrf.mxu0
    %v940 = vadd.f32 0.0, %v939
    %941 = vmatmul.f32.gmra.mxu0 %v920
    %v942 = vpop.f32.mrf.mxu0
    %v943 = vadd.f32 0.0, %v942
    %944 = vdwg.mxu0
    %v945 = vrot.slane %v176, 4
    %v947 = vsel %vm184, %v940, 0
    %v950 = vsel %vm184, %v943, 0
    %v952 = vsel %vm386, %v945, 0
    %954 = vmatpush.msra.mxu0 0.0
    %955 = vmatpush.msra.mxu0 0.0
    %956 = vmatpush.msra.mxu0 0.0
    %957 = vmatpush.msra.mxu0 0.0
    %958 = vmatpush.msra.mxu0 0.0
    %959 = vmatpush.msra.mxu0 0.0
    %960 = vmatpush.msra.mxu0 0.0
    %961 = vmatpush.msra.mxu0 0.0
    %962 = vmatpush.msra.mxu0 0.0
    %963 = vmatpush.msra.mxu0 0.0
    %964 = vmatpush.msra.mxu0 0.0
    %965 = vmatpush.msra.mxu0 0.0
    %966 = vmatpush.msra.mxu0 0.0
    %967 = vmatpush.msra.mxu0 0.0
    %968 = vmatpush.msra.mxu0 0.0
    %969 = vmatpush.msra.mxu0 %v952
    %970 = vmatmul.f32.gmra.mxu0 %v947
    %v971 = vpop.f32.mrf.mxu0
    %v972 = vadd.f32 0.0, %v971
    %973 = vmatmul.f32.gmra.mxu0 %v950
    %v974 = vpop.f32.mrf.mxu0
    %v975 = vadd.f32 0.0, %v974
    %976 = vdwg.mxu0
    %v977 = vadd.f32 %v843, %v972
    %v978 = vadd.f32 %v844, %v975
    %979 = vrot.lane.b32.xlu0 %v169, 104
    %v980 = vpop.permute.xlu0 %979
    %981 = vrot.lane.b32.xlu0 %v172, 104
    %v982 = vpop.permute.xlu0 %981
    %983 = vrot.lane.b32.xlu0 %v169, 72
    %v984 = vpop.permute.xlu0 %983
    %985 = vrot.lane.b32.xlu0 %v172, 72
    %v986 = vpop.permute.xlu0 %985
    %v987 = vsel %vm184, %v980, 0
    %v989 = vsel %vm184, %v982, 0
    %v991 = vsel %vm184, %v984, 0
    %v993 = vsel %vm184, %v986, 0
    %995 = vmatpush.xpose.msra.mxu0 0.0
    %996 = vmatpush.xpose.msra.mxu0 0.0
    %997 = vmatpush.xpose.msra.mxu0 0.0
    %998 = vmatpush.xpose.msra.mxu0 0.0
    %999 = vmatpush.xpose.msra.mxu0 0.0
    %1000 = vmatpush.xpose.msra.mxu0 0.0
    %1001 = vmatpush.xpose.msra.mxu0 0.0
    %1002 = vmatpush.xpose.msra.mxu0 0.0
    %1003 = vmatpush.xpose.msra.mxu0 0.0
    %1004 = vmatpush.xpose.msra.mxu0 0.0
    %1005 = vmatpush.xpose.msra.mxu0 0.0
    %1006 = vmatpush.xpose.msra.mxu0 0.0
    %1007 = vmatpush.xpose.msra.mxu0 0.0
    %1008 = vmatpush.xpose.msra.mxu0 0.0
    %1009 = vmatpush.xpose.msra.mxu0 %v993
    %1010 = vmatpush.xpose.msra.mxu0 %v991
    %1011 = vmatmul.f32.gmra.mxu0 %v987
    %v1012 = vpop.f32.mrf.mxu0
    %v1013 = vadd.f32 0.0, %v1012
    %1014 = vmatmul.f32.gmra.mxu0 %v989
    %v1015 = vpop.f32.mrf.mxu0
    %v1016 = vadd.f32 0.0, %v1015
    %1017 = vdwg.mxu0
    %v1018 = vmul.f32 %v1013, 0.5
    %v1019 = vmul.f32 %v1016, 0.5
    %v1020 = vadd.f32 %v1018, %v138
    %v1021 = vadd.f32 %v1019, %v139
    %v1022 = vsel %vm220, %v1020, -inf
    %1023 = vmax.xlane.f32.xlu0 %v1022
    %v1024 = vpop.xlane.xlu0 %1023
    %v1025 = vsel %vm220, %v1021, -inf
    %1026 = vmax.xlane.f32.xlu0 %v1025
    %v1027 = vpop.xlane.xlu0 %1026
    %v1028 = vsub.f32 %v1020, %v1024
    %v1029 = vsub.f32 %v1021, %v1027
    %v1030 = vmul.f32 %v1028, 1.442695
    %v1031 = vpow.pop %v1030
    %v1032 = vmul.f32 %v1029, 1.442695
    %v1033 = vpow.pop %v1032
    %v1034 = vsel %vm220, %v1031, 0.0
    %1035 = vadd.xlane.f32.xlu0 %v1034
    %v1036 = vpop.xlane.xlu0 %1035
    %v1037 = vsel %vm220, %v1033, 0.0
    %1038 = vadd.xlane.f32.xlu0 %v1037
    %v1039 = vpop.xlane.xlu0 %1038
    %v1040 = vrcp.pop %v1036
    %v1041 = vrcp.pop %v1039
    %v1042 = vmul.f32 %v1031, %v1040
    %v1043 = vmul.f32 %v1033, %v1041
    %1044 = vrot.lane.b32.xlu0 %v169, 40
    %v1045 = vpop.permute.xlu0 %1044
    %1046 = vrot.lane.b32.xlu0 %v172, 40
    %v1047 = vpop.permute.xlu0 %1046
    %v1051 = vsel %vm220, %v1042, 0
    %v1054 = vsel %vm220, %v1043, 0
    %1056 = vmatpush.msra.mxu0 0.0
    %1057 = vmatpush.msra.mxu0 0.0
    %1058 = vmatpush.msra.mxu0 0.0
    %1059 = vmatpush.msra.mxu0 0.0
    %1060 = vmatpush.msra.mxu0 0.0
    %1061 = vmatpush.msra.mxu0 0.0
    %1062 = vmatpush.msra.mxu0 0.0
    %1063 = vmatpush.msra.mxu0 0.0
    %1064 = vmatpush.msra.mxu0 0.0
    %1065 = vmatpush.msra.mxu0 0.0
    %1066 = vmatpush.msra.mxu0 0.0
    %1067 = vmatpush.msra.mxu0 0.0
    %1068 = vmatpush.msra.mxu0 0.0
    %1069 = vmatpush.msra.mxu0 0.0
    %1070 = vmatpush.msra.mxu0 %v1047
    %1071 = vmatpush.msra.mxu0 %v1045
    %1072 = vmatmul.f32.gmra.mxu0 %v1051
    %v1073 = vpop.f32.mrf.mxu0
    %v1074 = vadd.f32 0.0, %v1073
    %1075 = vmatmul.f32.gmra.mxu0 %v1054
    %v1076 = vpop.f32.mrf.mxu0
    %v1077 = vadd.f32 0.0, %v1076
    %1078 = vdwg.mxu0
    %v1080 = vsel %vm184, %v1074, 0
    %v1083 = vsel %vm184, %v1077, 0
    %v1086 = vsel %vm386, %v177, 0
    %1088 = vmatpush.msra.mxu0 0.0
    %1089 = vmatpush.msra.mxu0 0.0
    %1090 = vmatpush.msra.mxu0 0.0
    %1091 = vmatpush.msra.mxu0 0.0
    %1092 = vmatpush.msra.mxu0 0.0
    %1093 = vmatpush.msra.mxu0 0.0
    %1094 = vmatpush.msra.mxu0 0.0
    %1095 = vmatpush.msra.mxu0 0.0
    %1096 = vmatpush.msra.mxu0 0.0
    %1097 = vmatpush.msra.mxu0 0.0
    %1098 = vmatpush.msra.mxu0 0.0
    %1099 = vmatpush.msra.mxu0 0.0
    %1100 = vmatpush.msra.mxu0 0.0
    %1101 = vmatpush.msra.mxu0 0.0
    %1102 = vmatpush.msra.mxu0 0.0
    %1103 = vmatpush.msra.mxu0 %v1086
    %1104 = vmatmul.f32.gmra.mxu0 %v1080
    %v1105 = vpop.f32.mrf.mxu0
    %v1106 = vadd.f32 0.0, %v1105
    %1107 = vmatmul.f32.gmra.mxu0 %v1083
    %v1108 = vpop.f32.mrf.mxu0
    %v1109 = vadd.f32 0.0, %v1108
    %1110 = vdwg.mxu0
    %v1111 = vadd.f32 %v977, %v1106
    %v1112 = vadd.f32 %v978, %v1109
    %1113 = vrot.lane.b32.xlu0 %v169, 100
    %v1114 = vpop.permute.xlu0 %1113
    %1115 = vrot.lane.b32.xlu0 %v172, 100
    %v1116 = vpop.permute.xlu0 %1115
    %1117 = vrot.lane.b32.xlu0 %v169, 68
    %v1118 = vpop.permute.xlu0 %1117
    %1119 = vrot.lane.b32.xlu0 %v172, 68
    %v1120 = vpop.permute.xlu0 %1119
    %v1121 = vsel %vm184, %v1114, 0
    %v1123 = vsel %vm184, %v1116, 0
    %v1125 = vsel %vm184, %v1118, 0
    %v1127 = vsel %vm184, %v1120, 0
    %1129 = vmatpush.xpose.msra.mxu0 0.0
    %1130 = vmatpush.xpose.msra.mxu0 0.0
    %1131 = vmatpush.xpose.msra.mxu0 0.0
    %1132 = vmatpush.xpose.msra.mxu0 0.0
    %1133 = vmatpush.xpose.msra.mxu0 0.0
    %1134 = vmatpush.xpose.msra.mxu0 0.0
    %1135 = vmatpush.xpose.msra.mxu0 0.0
    %1136 = vmatpush.xpose.msra.mxu0 0.0
    %1137 = vmatpush.xpose.msra.mxu0 0.0
    %1138 = vmatpush.xpose.msra.mxu0 0.0
    %1139 = vmatpush.xpose.msra.mxu0 0.0
    %1140 = vmatpush.xpose.msra.mxu0 0.0
    %1141 = vmatpush.xpose.msra.mxu0 0.0
    %1142 = vmatpush.xpose.msra.mxu0 0.0
    %1143 = vmatpush.xpose.msra.mxu0 %v1127
    %1144 = vmatpush.xpose.msra.mxu0 %v1125
    %1145 = vmatmul.f32.gmra.mxu0 %v1121
    %v1146 = vpop.f32.mrf.mxu0
    %v1147 = vadd.f32 0.0, %v1146
    %1148 = vmatmul.f32.gmra.mxu0 %v1123
    %v1149 = vpop.f32.mrf.mxu0
    %v1150 = vadd.f32 0.0, %v1149
    %1151 = vdwg.mxu0
    %v1152 = vmul.f32 %v1147, 0.5
    %v1153 = vmul.f32 %v1150, 0.5
    %v1154 = vadd.f32 %v1152, %v138
    %v1155 = vadd.f32 %v1153, %v139
    %v1156 = vsel %vm220, %v1154, -inf
    %1157 = vmax.xlane.f32.xlu0 %v1156
    %v1158 = vpop.xlane.xlu0 %1157
    %v1159 = vsel %vm220, %v1155, -inf
    %1160 = vmax.xlane.f32.xlu0 %v1159
    %v1161 = vpop.xlane.xlu0 %1160
    %v1162 = vsub.f32 %v1154, %v1158
    %v1163 = vsub.f32 %v1155, %v1161
    %v1164 = vmul.f32 %v1162, 1.442695
    %v1165 = vpow.pop %v1164
    %v1166 = vmul.f32 %v1163, 1.442695
    %v1167 = vpow.pop %v1166
    %v1168 = vsel %vm220, %v1165, 0.0
    %1169 = vadd.xlane.f32.xlu0 %v1168
    %v1170 = vpop.xlane.xlu0 %1169
    %v1171 = vsel %vm220, %v1167, 0.0
    %1172 = vadd.xlane.f32.xlu0 %v1171
    %v1173 = vpop.xlane.xlu0 %1172
    %v1174 = vrcp.pop %v1170
    %v1175 = vrcp.pop %v1173
    %v1176 = vmul.f32 %v1165, %v1174
    %v1177 = vmul.f32 %v1167, %v1175
    %1178 = vrot.lane.b32.xlu0 %v169, 36
    %v1179 = vpop.permute.xlu0 %1178
    %1180 = vrot.lane.b32.xlu0 %v172, 36
    %v1181 = vpop.permute.xlu0 %1180
    %v1185 = vsel %vm220, %v1176, 0
    %v1188 = vsel %vm220, %v1177, 0
    %1190 = vmatpush.msra.mxu0 0.0
    %1191 = vmatpush.msra.mxu0 0.0
    %1192 = vmatpush.msra.mxu0 0.0
    %1193 = vmatpush.msra.mxu0 0.0
    %1194 = vmatpush.msra.mxu0 0.0
    %1195 = vmatpush.msra.mxu0 0.0
    %1196 = vmatpush.msra.mxu0 0.0
    %1197 = vmatpush.msra.mxu0 0.0
    %1198 = vmatpush.msra.mxu0 0.0
    %1199 = vmatpush.msra.mxu0 0.0
    %1200 = vmatpush.msra.mxu0 0.0
    %1201 = vmatpush.msra.mxu0 0.0
    %1202 = vmatpush.msra.mxu0 0.0
    %1203 = vmatpush.msra.mxu0 0.0
    %1204 = vmatpush.msra.mxu0 %v1181
    %1205 = vmatpush.msra.mxu0 %v1179
    %1206 = vmatmul.f32.gmra.mxu0 %v1185
    %v1207 = vpop.f32.mrf.mxu0
    %v1208 = vadd.f32 0.0, %v1207
    %1209 = vmatmul.f32.gmra.mxu0 %v1188
    %v1210 = vpop.f32.mrf.mxu0
    %v1211 = vadd.f32 0.0, %v1210
    %1212 = vdwg.mxu0
    %v1213 = vrot.slane %v177, 4
    %v1215 = vsel %vm184, %v1208, 0
    %v1218 = vsel %vm184, %v1211, 0
    %v1220 = vsel %vm386, %v1213, 0
    %1222 = vmatpush.msra.mxu0 0.0
    %1223 = vmatpush.msra.mxu0 0.0
    %1224 = vmatpush.msra.mxu0 0.0
    %1225 = vmatpush.msra.mxu0 0.0
    %1226 = vmatpush.msra.mxu0 0.0
    %1227 = vmatpush.msra.mxu0 0.0
    %1228 = vmatpush.msra.mxu0 0.0
    %1229 = vmatpush.msra.mxu0 0.0
    %1230 = vmatpush.msra.mxu0 0.0
    %1231 = vmatpush.msra.mxu0 0.0
    %1232 = vmatpush.msra.mxu0 0.0
    %1233 = vmatpush.msra.mxu0 0.0
    %1234 = vmatpush.msra.mxu0 0.0
    %1235 = vmatpush.msra.mxu0 0.0
    %1236 = vmatpush.msra.mxu0 0.0
    %1237 = vmatpush.msra.mxu0 %v1220
    %1238 = vmatmul.f32.gmra.mxu0 %v1215
    %v1239 = vpop.f32.mrf.mxu0
    %v1240 = vadd.f32 0.0, %v1239
    %1241 = vmatmul.f32.gmra.mxu0 %v1218
    %v1242 = vpop.f32.mrf.mxu0
    %v1243 = vadd.f32 0.0, %v1242
    %1244 = vdwg.mxu0
    %v1245 = vadd.f32 %v1111, %v1240
    %v1246 = vadd.f32 %v1112, %v1243
    %v1247 = vadd.f32 %v136, %v1245
    %v1248 = vadd.f32 %v137, %v1246
    %v1249 = vld [vmem:[%s8] sm:$0x1]
    %v1250 = vld [vmem:[%s9] sm:$0x1]
    %v1251 = vsel %vm144, %v1247, 0.0
    %1252 = vadd.xlane.f32.xlu0 %v1251
    %v1253 = vpop.xlane.xlu0 %1252
    %v1254 = vsel %vm144, %v1248, 0.0
    %1255 = vadd.xlane.f32.xlu0 %v1254
    %v1256 = vpop.xlane.xlu0 %1255
    %v1257 = vrcp.pop 32.0
    %v1258 = vmul.f32 32.0, %v1257
    %v1259 = vsub.f32 1.0, %v1258
    %v1260 = vmul.f32 %v1257, %v1259
    %v1261 = vadd.f32 %v1257, %v1260
    %vm1262 = vweird.f32 %v1257
    %v1263 = vsel %vm1262, %v1257, %v1261
    %v1264 = vmul.f32 %v1253, %v1263
    %v1265 = vmul.f32 %v1256, %v1263
    %v1266 = vsub.f32 %v1247, %v1264
    %v1267 = vsub.f32 %v1248, %v1265
    %v1268 = vmul.f32 %v1266, %v1266
    %v1269 = vmul.f32 %v1267, %v1267
    %v1270 = vsel %vm144, %v1268, 0.0
    %1271 = vadd.xlane.f32.xlu0 %v1270
    %v1272 = vpop.xlane.xlu0 %1271
    %v1273 = vsel %vm144, %v1269, 0.0
    %1274 = vadd.xlane.f32.xlu0 %v1273
    %v1275 = vpop.xlane.xlu0 %1274
    %v1276 = vmul.f32 %v1272, %v1263
    %v1277 = vmul.f32 %v1275, %v1263
    %v1278 = vadd.f32 %v1276, 1e-05
    %v1279 = vadd.f32 %v1277, 1e-05
    %v1280 = vrsqrt.pop %v1278
    %v1281 = vmul.f32 %v1280, %v1278
    %v1282 = vmul.f32 %v1281, %v1280
    %v1283 = vmul.f32 0.5, %v1282
    %v1284 = vsub.f32 1.5, %v1283
    %v1285 = vmul.f32 %v1280, %v1284
    %vm1286 = vweird.f32 %v1278
    %vm1287 = vweird.f32 %v1280
    %vm1288 = vmor %vm1286, %vm1287
    %v1289 = vsel %vm1288, %v1280, %v1285
    %v1290 = vrsqrt.pop %v1279
    %v1291 = vmul.f32 %v1290, %v1279
    %v1292 = vmul.f32 %v1291, %v1290
    %v1293 = vmul.f32 0.5, %v1292
    %v1294 = vsub.f32 1.5, %v1293
    %v1295 = vmul.f32 %v1290, %v1294
    %vm1296 = vweird.f32 %v1279
    %vm1297 = vweird.f32 %v1290
    %vm1298 = vmor %vm1296, %vm1297
    %v1299 = vsel %vm1298, %v1290, %v1295
    %v1300 = vmul.f32 %v1266, %v1289
    %v1301 = vmul.f32 %v1267, %v1299
    %v1303 = vperm.slane %v1249, 0
    %v1305 = vmul.f32 %v1300, %v1303
    %v1306 = vmul.f32 %v1301, %v1303
    %v1308 = vperm.slane %v1250, 0
    %v1310 = vadd.f32 %v1305, %v1308
    %v1311 = vadd.f32 %v1306, %v1308
    %v1312 = vld [vmem:[#allocation10] sm:$0xff]
    %v1313 = vld [vmem:[#allocation10 + $0x8] sm:$0xff]
    %v1314 = vld [vmem:[#allocation10 + $0x10] sm:$0xff]
    %v1315 = vld [vmem:[#allocation10 + $0x18] sm:$0xff]
    %v1316 = vld [vmem:[%s5] sm:$0x1]
    %v1318 = vperm.slane %v1316, 0
    %v1321 = vsel %vm144, %v1310, 0
    %v1324 = vsel %vm144, %v1311, 0
    %1326 = vmatpush.msra.mxu0 0.0
    %1327 = vmatpush.msra.mxu0 0.0
    %1328 = vmatpush.msra.mxu0 0.0
    %1329 = vmatpush.msra.mxu0 0.0
    %1330 = vmatpush.msra.mxu0 0.0
    %1331 = vmatpush.msra.mxu0 0.0
    %1332 = vmatpush.msra.mxu0 0.0
    %1333 = vmatpush.msra.mxu0 0.0
    %1334 = vmatpush.msra.mxu0 0.0
    %1335 = vmatpush.msra.mxu0 0.0
    %1336 = vmatpush.msra.mxu0 0.0
    %1337 = vmatpush.msra.mxu0 0.0
    %1338 = vmatpush.msra.mxu0 %v1315
    %1339 = vmatpush.msra.mxu0 %v1314
    %1340 = vmatpush.msra.mxu0 %v1313
    %1341 = vmatpush.msra.mxu0 %v1312
    %1342 = vmatmul.f32.gmra.mxu0 %v1321
    %v1343 = vpop.f32.mrf.mxu0
    %v1344 = vadd.f32 %v1318, %v1343
    %1345 = vmatmul.f32.gmra.mxu0 %v1324
    %v1346 = vpop.f32.mrf.mxu0
    %v1347 = vadd.f32 %v1318, %v1346
    %1348 = vdwg.mxu0
    %v1349 = vmul.f32 %v1344, 0.5
    %v1350 = vmul.f32 %v1347, 0.5
    %v1351 = vmul.f32 %v1344, 0.70710677
    %v1352 = vmul.f32 %v1347, 0.70710677
    %v1353 = vmul.f32 %v1351, %v1351
    %v1354 = vmin.f32 16.0, %v1353
    %v1355 = vmul.f32 %v1354, 2.1237322e-06
    %v1356 = vadd.f32 %v1355, 0.00028619796
    %v1357 = vmul.f32 %v1354, %v1356
    %v1358 = vadd.f32 %v1357, 0.0036580483
    %v1359 = vmul.f32 %v1354, %v1358
    %v1360 = vadd.f32 %v1359, 0.05243302
    %v1361 = vmul.f32 %v1354, %v1360
    %v1362 = vadd.f32 %v1361, 0.18741608
    %v1363 = vmul.f32 %v1354, %v1362
    %v1364 = vadd.f32 %v1363, 1.1283791
    %v1365 = vmul.f32 %v1351, %v1364
    %v1366 = vmul.f32 %v1354, 3.8918573e-05
    %v1367 = vadd.f32 %v1366, 0.001143296
    %v1368 = vmul.f32 %v1354, %v1367
    %v1369 = vadd.f32 %v1368, 0.014752088
    %v1370 = vmul.f32 %v1354, %v1369
    %v1371 = vadd.f32 %v1370, 0.112945676
    %v1372 = vmul.f32 %v1354, %v1371
    %v1373 = vadd.f32 %v1372, 0.4994258
    %v1374 = vmul.f32 %v1354, %v1373
    %v1375 = vadd.f32 %v1374, 1.0
    %v1376 = vrcp.pop %v1375
    %v1377 = vmul.f32 %v1375, %v1376
    %v1378 = vsub.f32 1.0, %v1377
    %v1379 = vmul.f32 %v1376, %v1378
    %v1380 = vadd.f32 %v1376, %v1379
    %vm1381 = vweird.f32 %v1375
    %vm1382 = vweird.f32 %v1376
    %vm1383 = vmor %vm1381, %vm1382
    %v1384 = vsel %vm1383, %v1376, %v1380
    %v1385 = vand.u32 2147483647, %v1375
    %vm1386 = vcmp.eq.f32.partialorder %v1385, 8.507059e+37
    %v1387 = vand.u32 %v1375, 2147483648
    %v1388 = vor.u32 1.1754944e-38, %v1387
    %v1389 = vsel %vm1386, %v1388, %v1384
    %v1390 = vmul.f32 %v1365, %v1389
    %v1391 = vmin.f32 %v1390, 1.0
    %v1392 = vmax.f32 %v1391, -1.0
    %v1393 = vmul.f32 %v1352, %v1352
    %v1394 = vmin.f32 16.0, %v1393
    %v1395 = vmul.f32 %v1394, 2.1237322e-06
    %v1396 = vadd.f32 %v1395, 0.00028619796
    %v1397 = vmul.f32 %v1394, %v1396
    %v1398 = vadd.f32 %v1397, 0.0036580483
    %v1399 = vmul.f32 %v1394, %v1398
    %v1400 = vadd.f32 %v1399, 0.05243302
    %v1401 = vmul.f32 %v1394, %v1400
    %v1402 = vadd.f32 %v1401, 0.18741608
    %v1403 = vmul.f32 %v1394, %v1402
    %v1404 = vadd.f32 %v1403, 1.1283791
    %v1405 = vmul.f32 %v1352, %v1404
    %v1406 = vmul.f32 %v1394, 3.8918573e-05
    %v1407 = vadd.f32 %v1406, 0.001143296
    %v1408 = vmul.f32 %v1394, %v1407
    %v1409 = vadd.f32 %v1408, 0.014752088
    %v1410 = vmul.f32 %v1394, %v1409
    %v1411 = vadd.f32 %v1410, 0.112945676
    %v1412 = vmul.f32 %v1394, %v1411
    %v1413 = vadd.f32 %v1412, 0.4994258
    %v1414 = vmul.f32 %v1394, %v1413
    %v1415 = vadd.f32 %v1414, 1.0
    %v1416 = vrcp.pop %v1415
    %v1417 = vmul.f32 %v1415, %v1416
    %v1418 = vsub.f32 1.0, %v1417
    %v1419 = vmul.f32 %v1416, %v1418
    %v1420 = vadd.f32 %v1416, %v1419
    %vm1421 = vweird.f32 %v1415
    %vm1422 = vweird.f32 %v1416
    %vm1423 = vmor %vm1421, %vm1422
    %v1424 = vsel %vm1423, %v1416, %v1420
    %v1425 = vand.u32 2147483647, %v1415
    %vm1426 = vcmp.eq.f32.partialorder %v1425, 8.507059e+37
    %v1427 = vand.u32 %v1415, 2147483648
    %v1428 = vor.u32 1.1754944e-38, %v1427
    %v1429 = vsel %vm1426, %v1428, %v1424
    %v1430 = vmul.f32 %v1405, %v1429
    %v1431 = vmin.f32 %v1430, 1.0
    %v1432 = vmax.f32 %v1431, -1.0
    %v1433 = vadd.f32 %v1392, 1.0
    %v1434 = vadd.f32 %v1432, 1.0
    %v1435 = vmul.f32 %v1349, %v1433
    %v1436 = vmul.f32 %v1350, %v1434
    %v1437 = vld [vmem:[#allocation11] sm:$0xff]
    %v1438 = vld [vmem:[#allocation11 + $0x8] sm:$0xff]
    %v1439 = vld [vmem:[#allocation11 + $0x10] sm:$0xff]
    %v1440 = vld [vmem:[#allocation11 + $0x18] sm:$0xff]
    %v1441 = vld [vmem:[%s7] sm:$0x1]
    %v1443 = vperm.slane %v1441, 0
    %v1446 = vsel %vm144, %v1435, 0
    %v1449 = vsel %vm144, %v1436, 0
    %1451 = vmatpush.msra.mxu0 0.0
    %1452 = vmatpush.msra.mxu0 0.0
    %1453 = vmatpush.msra.mxu0 0.0
    %1454 = vmatpush.msra.mxu0 0.0
    %1455 = vmatpush.msra.mxu0 0.0
    %1456 = vmatpush.msra.mxu0 0.0
    %1457 = vmatpush.msra.mxu0 0.0
    %1458 = vmatpush.msra.mxu0 0.0
    %1459 = vmatpush.msra.mxu0 0.0
    %1460 = vmatpush.msra.mxu0 0.0
    %1461 = vmatpush.msra.mxu0 0.0
    %1462 = vmatpush.msra.mxu0 0.0
    %1463 = vmatpush.msra.mxu0 %v1440
    %1464 = vmatpush.msra.mxu0 %v1439
    %1465 = vmatpush.msra.mxu0 %v1438
    %1466 = vmatpush.msra.mxu0 %v1437
    %1467 = vmatmul.f32.gmra.mxu0 %v1446
    %v1468 = vpop.f32.mrf.mxu0
    %v1469 = vadd.f32 %v1443, %v1468
    %1470 = vmatmul.f32.gmra.mxu0 %v1449
    %v1471 = vpop.f32.mrf.mxu0
    %v1472 = vadd.f32 %v1443, %v1471
    %1473 = vdwg.mxu0
    %v1474 = vadd.f32 %v1469, %v1310
    %v1475 = vadd.f32 %v1472, %v1311
    %v1476 = vld [vmem:[%s10] sm:$0x1]
    %v1477 = vld [vmem:[%s11] sm:$0x1]
    %v1478 = vsel %vm144, %v1474, 0.0
    %1479 = vadd.xlane.f32.xlu0 %v1478
    %v1480 = vpop.xlane.xlu0 %1479
    %v1481 = vsel %vm144, %v1475, 0.0
    %1482 = vadd.xlane.f32.xlu0 %v1481
    %v1483 = vpop.xlane.xlu0 %1482
    %v1484 = vmul.f32 %v1480, %v1263
    %v1485 = vmul.f32 %v1483, %v1263
    %v1486 = vsub.f32 %v1474, %v1484
    %v1487 = vsub.f32 %v1475, %v1485
    %v1488 = vmul.f32 %v1486, %v1486
    %v1489 = vmul.f32 %v1487, %v1487
    %v1490 = vsel %vm144, %v1488, 0.0
    %1491 = vadd.xlane.f32.xlu0 %v1490
    %v1492 = vpop.xlane.xlu0 %1491
    %v1493 = vsel %vm144, %v1489, 0.0
    %1494 = vadd.xlane.f32.xlu0 %v1493
    %v1495 = vpop.xlane.xlu0 %1494
    %v1496 = vmul.f32 %v1492, %v1263
    %v1497 = vmul.f32 %v1495, %v1263
    %v1498 = vadd.f32 %v1496, 1e-05
    %v1499 = vadd.f32 %v1497, 1e-05
    %v1500 = vrsqrt.pop %v1498
    %v1501 = vmul.f32 %v1500, %v1498
    %v1502 = vmul.f32 %v1501, %v1500
    %v1503 = vmul.f32 0.5, %v1502
    %v1504 = vsub.f32 1.5, %v1503
    %v1505 = vmul.f32 %v1500, %v1504
    %vm1506 = vweird.f32 %v1498
    %vm1507 = vweird.f32 %v1500
    %vm1508 = vmor %vm1506, %vm1507
    %v1509 = vsel %vm1508, %v1500, %v1505
    %v1510 = vrsqrt.pop %v1499
    %v1511 = vmul.f32 %v1510, %v1499
    %v1512 = vmul.f32 %v1511, %v1510
    %v1513 = vmul.f32 0.5, %v1512
    %v1514 = vsub.f32 1.5, %v1513
    %v1515 = vmul.f32 %v1510, %v1514
    %vm1516 = vweird.f32 %v1499
    %vm1517 = vweird.f32 %v1510
    %vm1518 = vmor %vm1516, %vm1517
    %v1519 = vsel %vm1518, %v1510, %v1515
    %v1520 = vmul.f32 %v1486, %v1509
    %v1521 = vmul.f32 %v1487, %v1519
    %v1523 = vperm.slane %v1476, 0
    %v1525 = vmul.f32 %v1520, %v1523
    %v1526 = vmul.f32 %v1521, %v1523
    %v1528 = vperm.slane %v1477, 0
    %v1530 = vadd.f32 %v1525, %v1528
    %v1531 = vadd.f32 %v1526, %v1528
    %1532 = vst.msk [vmem:[#allocation13] sm:$0xff] %vm144, %v1530
    %1533 = vst.msk [vmem:[#allocation13 + $0x8] sm:$0xff] %vm144, %v1531
    // Predicated region
    $region74: #{tpu_custom_call.1} parent=1 // pred_check
      _
    $region75: #{tpu_custom_call.1} parent=1 // pred_check_branch
      %1535 = sbr.rel (0) target = $region77
    $region76: #{tpu_custom_call.1} parent=1 // pred_region
      %1537 = vsyncadd [#allocation4], 0
      %s1538 = sshll.u32 [#allocation13], 4
      %s1539 = int_to_ptr.vmem [resolvable:$true] %s1538
      %s1540 = sshll.u32 %s12, 4
      %s1541 = int_to_ptr.hbm [resolvable:$true] %s1540
      %1546 = dma.vmem_to_hbm [thread:$0]  %s1539, 256, %s1541, [#allocation4], 128, 128, 8
    $region77: #{tpu_custom_call.1} parent=1 // pred_fallthru
      _
    // Predicated region
    $region78: #{tpu_custom_call.1} parent=1 // pred_check
      _
    $region79: #{tpu_custom_call.1} parent=1 // pred_check_branch
      %1548 = sbr.rel (0) target = $region81
    $region80: #{tpu_custom_call.1} parent=1 // pred_region
      %1550 = dma.done [#allocation4], 256
    $region81: #{tpu_custom_call.1} parent=1 // pred_fallthru
      _
    %1551 = vsyncpa [#allocation3], 1
    %1552 = vsyncpa [#allocation6], 1
    %1553 = vsyncpa [#allocation9], 1
    %1554 = vsyncpa [#allocation12], 1
    %1555 = vsyncpa [#allocation4], 1

</llo_original>
